<compile_context>
chip_gen: v7x
topology: tpu7x:2x2x1
jax: 0.10.0
libtpu: 0.0.40
codegen_flags: <defaults>
</compile_context>

<pallas_src>
import functools
import math

import jax
import jax.numpy as jnp
from jax import lax
from jax.experimental import pallas as pl
from jax.experimental.pallas import tpu as pltpu


def _refined_reciprocal(z):
    """EUP approx reciprocal + one Newton-Raphson step (~f32 accuracy)."""
    r = pl.reciprocal(z, approx=True)
    return r * (2.0 - z * r)


def _encoder_norm_kernel(x_ref, sel_ref, alpha_ref, bias_ref, o_ref, *,
                         eps: float, d: int, k: int):
    """x_ref: (TR, Dp) tile with Dp = k*d.  Each physical row packs k logical
    rows of d features; normalization is per logical row (original last dim).
    sel_ref: (k, Dp) block-diagonal 0/1 selector (lane j belongs to segment
    j // d), used to run segment reductions / broadcasts on the idle MXU."""
    x = x_ref[...].astype(jnp.float32)            # (TR, Dp)
    sel = sel_ref[...]                            # (k, Dp) f32
    alpha = alpha_ref[...].astype(jnp.float32)    # (1, Dp)
    bias = bias_ref[...].astype(jnp.float32)      # (1, Dp)

    dn = (((1,), (1,)), ((), ()))                 # contract lane axis

    # One-pass segment statistics: the two reductions are independent MXU ops.
    seg_sum = lax.dot_general(x, sel, dn,
                              precision=lax.Precision.HIGHEST,
                              preferred_element_type=jnp.float32)      # (TR, k)
    seg_sq = lax.dot_general(x * x, sel, dn,
                             precision=lax.Precision.HIGHEST,
                             preferred_element_type=jnp.float32)       # (TR, k)

    mean = seg_sum * (1.0 / d)
    var = (seg_sq - seg_sum * mean) * (1.0 / (d - 1))     # unbiased, one-pass
    var = jnp.maximum(var, 0.0)                           # guard cancellation
    inv = _refined_reciprocal(jnp.sqrt(var) + eps)        # (TR, k)
    shift = -mean * inv                                   # (TR, k)

    if k == 1:
        # (TR, 1) stats broadcast over lanes directly.
        inv_b, shift_b = inv, shift
    else:
        # Two independent broadcast matmuls (chain depth 2 total).
        inv_b = jnp.dot(inv, sel, precision=lax.Precision.HIGHEST,
                        preferred_element_type=jnp.float32)            # (TR, Dp)
        shift_b = jnp.dot(shift, sel, precision=lax.Precision.HIGHEST,
                          preferred_element_type=jnp.float32)          # (TR, Dp)

    # alpha * (x - mean) * inv + bias  ==  alpha * (x*inv + shift) + bias
    y = (x * inv_b + shift_b) * alpha + bias
    o_ref[...] = y.astype(o_ref.dtype)


def _tile_budget():
    """(per-pipelined-buffer byte target, vmem_limit_bytes) per TPU generation."""
    try:
        kind = jax.devices()[0].device_kind.lower()
    except Exception:
        kind = ""
    if "v5" in kind or "v6" in kind:        # 128 MiB physical VMEM
        return 8 * 1024 * 1024, 96 * 1024 * 1024
    if "v7" in kind:                        # 64 MiB physical VMEM
        return 4 * 1024 * 1024, 48 * 1024 * 1024
    return 2 * 1024 * 1024, None            # unknown part: stay conservative


def encoder_forward(x, mask, alpha, bias, *, eps: float = 1e-6):
    """Encoder.forward with an empty layer list: for layer in []: ...; norm(x).

    x:     (B, S, D)
    mask:  unused by the (empty) layer stack, kept for signature parity
    alpha: (D,) LayerNorm scale
    bias:  (D,) LayerNorm shift
    """
    del mask  # no encoder layers provided -> mask is unused
    B, S, D = x.shape
    assert D > 1, "unbiased std (torch.std) requires D > 1"
    rows = B * S
    dtype = x.dtype

    # Lane-dense packing: k = lcm(D, 128) / D logical rows per packed physical
    # row (Dp = lcm(D, 128) lanes) whenever that keeps Dp reasonable.
    g = math.gcd(D, 128)
    k_cand = 128 // g
    dp_cand = D * k_cand
    if k_cand > 1 and dp_cand <= 1024:
        k, Dp = k_cand, dp_cand
    else:
        k, Dp = 1, D

    # Flatten; pad rows only up to the next multiple of k (<= k-1 rows) so the
    # packing reshape is a free metadata op.  No grid-level padding.
    x2d = x.reshape(rows, D)
    rows_k = ((rows + k - 1) // k) * k
    if rows_k != rows:
        x2d = jnp.pad(x2d, ((0, rows_k - rows), (0, 0)))
    rp = rows_k // k
    xp = x2d.reshape(rp, Dp)

    # Row-tile: sized on f32 compute footprint against the per-buffer byte
    # target; multiple of 8 sublanes; ragged last block handled by cdiv grid.
    per_buf_bytes, vmem_limit = _tile_budget()
    rt = max(8, per_buf_bytes // (Dp * 4))
    rt = (rt // 8) * 8
    if rp <= rt:
        rt = rp                      # single block == full (possibly odd) extent
    grid = pl.cdiv(rp, rt)

    # Invariant VMEM residents: packed alpha/bias and the segment selector.
    alpha_p = jnp.tile(jnp.reshape(alpha, (1, D)), (1, k)).astype(jnp.float32)
    bias_p = jnp.tile(jnp.reshape(bias, (1, D)), (1, k)).astype(jnp.float32)
    lane = jnp.arange(Dp, dtype=jnp.int32)[None, :]
    seg = jnp.arange(k, dtype=jnp.int32)[:, None]
    sel = (lane // D == seg).astype(jnp.float32)           # (k, Dp)

    kernel = functools.partial(_encoder_norm_kernel, eps=float(eps), d=D, k=k)

    cp_kwargs = dict(dimension_semantics=("parallel",))
    if vmem_limit is not None:
        cp_kwargs["vmem_limit_bytes"] = vmem_limit
    # TODO(synk): on v7x verify with xprof that the row-tile axis is sharded
    # across both TensorCores; switch to pltpu.CORE_PARALLEL if it is not.

    out_p = pl.pallas_call(
        kernel,
        out_shape=jax.ShapeDtypeStruct((rp, Dp), dtype),
        grid_spec=pltpu.PrefetchScalarGridSpec(
            num_scalar_prefetch=0,
            grid=(grid,),
            in_specs=[
                pl.BlockSpec((rt, Dp), lambda i: (i, 0)),
                # Invariants: whole-array VMEM residents, no per-step DMA.
                pl.BlockSpec(memory_space=pltpu.MemorySpace.VMEM),
                pl.BlockSpec(memory_space=pltpu.MemorySpace.VMEM),
                pl.BlockSpec(memory_space=pltpu.MemorySpace.VMEM),
            ],
            out_specs=pl.BlockSpec((rt, Dp), lambda i: (i, 0)),
        ),
        compiler_params=pltpu.CompilerParams(**cp_kwargs),
    )(xp, sel, alpha_p, bias_p)

    out2d = out_p.reshape(rows_k, D)
    if rows_k != rows:
        out2d = out2d[:rows]
    return out2d.reshape(B, S, D)


if __name__ == "__main__":
    # Small shapes implied by the forward: (batch, seq, d_model)
    B, S, D = 2, 8, 32

    key = jax.random.PRNGKey(0)
    kx, _ = jax.random.split(key)

    x = jax.random.normal(kx, (B, S, D), dtype=jnp.float32)
    mask = jnp.ones((B, 1, 1, S), dtype=jnp.float32)  # unused (no encoder layers)

    # Deterministic parameter init, matching nn.Parameter(torch.ones/zeros(D))
    alpha = jnp.ones((D,), dtype=jnp.float32)
    bias = jnp.zeros((D,), dtype=jnp.float32)

    out = encoder_forward(x, mask, alpha, bias)
    jax.block_until_ready(out)

    # Reference check in plain JAX (same unbiased-std / eps-on-std semantics
    # as torch.std and the PyTorch module).
    mean = x.mean(axis=-1, keepdims=True)
    std = jnp.sqrt(jnp.sum((x - mean) ** 2, axis=-1, keepdims=True) / (D - 1))
    ref = alpha * (x - mean) / (std + 1e-6) + bias
    # Tolerance loosened vs exact divide: EUP approx reciprocal refined with one
    # Newton step and one-pass variance (f32-precision MXU stats).
    err = float(jnp.max(jnp.abs(out - ref)))
    assert jnp.allclose(out, ref, atol=1e-4, rtol=1e-4), err

    # TODO(synk): the `layers` ModuleList is an injected dependency with no
    # concrete layer definition in model.py; it is treated as empty (identity).
    print("KERNEL_OK")
</pallas_src>

<mosaic_0001>
module attributes {stable_mosaic.version = 11 : i64} {
  func.func @_encoder_norm_kernel(%arg0: i32, %arg1: memref<4x128xf32, #tpu.memory_space<vmem>>, %arg2: memref<4x128xf32, #tpu.memory_space<vmem>>, %arg3: memref<1x128xf32, #tpu.memory_space<vmem>>, %arg4: memref<1x128xf32, #tpu.memory_space<vmem>>, %arg5: memref<4x128xf32, #tpu.memory_space<vmem>>) attributes {dimension_semantics = [#tpu.dimension_semantics<parallel>], iteration_bounds = array<i64: 1>, scalar_prefetch = 0 : i64, scratch_operands = 0 : i64, tpu.core_type = #tpu.core_type<tc>, window_params = [{transform_indices = @transform_0, window_bounds = array<i64: 4, 128>}, {pipeline_mode = #tpu.pipeline_mode<synchronous>, transform_indices = @transform_1, window_bounds = array<i64: 4, 128>}, {pipeline_mode = #tpu.pipeline_mode<synchronous>, transform_indices = @transform_2, window_bounds = array<i64: 1, 128>}, {pipeline_mode = #tpu.pipeline_mode<synchronous>, transform_indices = @transform_3, window_bounds = array<i64: 1, 128>}, {transform_indices = @transform_4, window_bounds = array<i64: 4, 128>}]} {
    %c0 = arith.constant 0 : index
    %c0_0 = arith.constant 0 : index
    %0 = vector.load %arg1[%c0, %c0_0] : memref<4x128xf32, #tpu.memory_space<vmem>>, vector<4x128xf32>
    %c0_1 = arith.constant 0 : index
    %c0_2 = arith.constant 0 : index
    %1 = vector.load %arg2[%c0_1, %c0_2] : memref<4x128xf32, #tpu.memory_space<vmem>>, vector<4x128xf32>
    %c0_3 = arith.constant 0 : index
    %c0_4 = arith.constant 0 : index
    %2 = vector.load %arg3[%c0_3, %c0_4] : memref<1x128xf32, #tpu.memory_space<vmem>>, vector<1x128xf32>
    %c0_5 = arith.constant 0 : index
    %c0_6 = arith.constant 0 : index
    %3 = vector.load %arg4[%c0_5, %c0_6] : memref<1x128xf32, #tpu.memory_space<vmem>>, vector<1x128xf32>
    %cst = arith.constant dense<0.000000e+00> : vector<4x4xf32>
    %4 = tpu.matmul %0, %1, %cst {dimension_numbers = #tpu.dot_dimension_numbers<[1], [1], [0], [0], [0, 0, 1, 0], [], []>, precision = #tpu.contract_precision<fp32>} : vector<4x128xf32>, vector<4x128xf32>, vector<4x4xf32> -> vector<4x4xf32>
    %5 = arith.mulf %0, %0 : vector<4x128xf32>
    %cst_7 = arith.constant dense<0.000000e+00> : vector<4x4xf32>
    %6 = tpu.matmul %5, %1, %cst_7 {dimension_numbers = #tpu.dot_dimension_numbers<[1], [1], [0], [0], [0, 0, 1, 0], [], []>, precision = #tpu.contract_precision<fp32>} : vector<4x128xf32>, vector<4x128xf32>, vector<4x4xf32> -> vector<4x4xf32>
    %cst_8 = arith.constant 3.125000e-02 : f32
    %7 = vector.broadcast %cst_8 : f32 to vector<4x4xf32>
    %8 = arith.mulf %4, %7 : vector<4x4xf32>
    %9 = arith.mulf %4, %8 : vector<4x4xf32>
    %10 = arith.subf %6, %9 : vector<4x4xf32>
    %cst_9 = arith.constant 0.0322580636 : f32
    %11 = vector.broadcast %cst_9 : f32 to vector<4x4xf32>
    %12 = arith.mulf %10, %11 : vector<4x4xf32>
    %cst_10 = arith.constant 0.000000e+00 : f32
    %13 = vector.broadcast %cst_10 : f32 to vector<4x4xf32>
    %14 = arith.maximumf %12, %13 : vector<4x4xf32>
    %15 = math.sqrt %14 : vector<4x4xf32>
    %cst_11 = arith.constant 9.99999997E-7 : f32
    %16 = vector.broadcast %cst_11 : f32 to vector<4x4xf32>
    %17 = arith.addf %15, %16 : vector<4x4xf32>
    %18 = tpu.reciprocal %17 {approx = true} : vector<4x4xf32> -> vector<4x4xf32>
    %19 = arith.mulf %17, %18 : vector<4x4xf32>
    %cst_12 = arith.constant 2.000000e+00 : f32
    %20 = vector.broadcast %cst_12 : f32 to vector<4x4xf32>
    %21 = arith.subf %20, %19 : vector<4x4xf32>
    %22 = arith.mulf %18, %21 : vector<4x4xf32>
    %cst_13 = arith.constant 0.000000e+00 : f32
    %23 = vector.broadcast %cst_13 : f32 to vector<4x4xf32>
    %24 = arith.subf %23, %8 : vector<4x4xf32>
    %25 = arith.mulf %24, %22 : vector<4x4xf32>
    %cst_14 = arith.constant dense<0.000000e+00> : vector<4x128xf32>
    %26 = tpu.matmul %22, %1, %cst_14 {dimension_numbers = #tpu.dot_dimension_numbers<[1], [0], [0], [1], [0, 0, 1, 1], [], []>, precision = #tpu.contract_precision<fp32>} : vector<4x4xf32>, vector<4x128xf32>, vector<4x128xf32> -> vector<4x128xf32>
    %cst_15 = arith.constant dense<0.000000e+00> : vector<4x128xf32>
    %27 = tpu.matmul %25, %1, %cst_15 {dimension_numbers = #tpu.dot_dimension_numbers<[1], [0], [0], [1], [0, 0, 1, 1], [], []>, precision = #tpu.contract_precision<fp32>} : vector<4x4xf32>, vector<4x128xf32>, vector<4x128xf32> -> vector<4x128xf32>
    %28 = arith.mulf %0, %26 : vector<4x128xf32>
    %29 = arith.addf %28, %27 : vector<4x128xf32>
    %30 = vector.broadcast %2 : vector<1x128xf32> to vector<4x128xf32>
    %31 = arith.mulf %29, %30 : vector<4x128xf32>
    %32 = vector.broadcast %3 : vector<1x128xf32> to vector<4x128xf32>
    %33 = arith.addf %31, %32 : vector<4x128xf32>
    %c0_16 = arith.constant 0 : index
    %c0_17 = arith.constant 0 : index
    %34 = vector.load %arg5[%c0_16, %c0_17] : memref<4x128xf32, #tpu.memory_space<vmem>>, vector<4x128xf32>
    tpu.vector_store %arg5[%c0_16, %c0_17], %33 {strides = array<i32>} : memref<4x128xf32, #tpu.memory_space<vmem>>, vector<4x128xf32>,
    return
  }
  func.func @transform_0(%arg0: i32) -> (i32, i32) {
    %c0_i32 = arith.constant 0 : i32
    %c0_i32_0 = arith.constant 0 : i32
    return %arg0, %c0_i32 : i32, i32
  }
  func.func @transform_1(%arg0: i32) -> (i32, i32) {
    %c0_i32 = arith.constant 0 : i32
    %c0_i32_0 = arith.constant 0 : i32
    %c0_i32_1 = arith.constant 0 : i32
    return %c0_i32, %c0_i32_0 : i32, i32
  }
  func.func @transform_2(%arg0: i32) -> (i32, i32) {
    %c0_i32 = arith.constant 0 : i32
    %c0_i32_0 = arith.constant 0 : i32
    %c0_i32_1 = arith.constant 0 : i32
    return %c0_i32, %c0_i32_0 : i32, i32
  }
  func.func @transform_3(%arg0: i32) -> (i32, i32) {
    %c0_i32 = arith.constant 0 : i32
    %c0_i32_0 = arith.constant 0 : i32
    %c0_i32_1 = arith.constant 0 : i32
    return %c0_i32, %c0_i32_0 : i32, i32
  }
  func.func @transform_4(%arg0: i32) -> (i32, i32) {
    %c0_i32 = arith.constant 0 : i32
    %c0_i32_0 = arith.constant 0 : i32
    return %arg0, %c0_i32 : i32, i32
  }
}

</mosaic_0001>

<llo_original>
// kernel: tpu_custom_call.1
$region0: #{tpu_custom_call.1}
  #allocation0 [shape = 'u32[]', space=smem, size = 0x4, offset = 0x4, fixed_abs, tag = 'smem constant byte address 0x4 - core index']
  #allocation1 [shape = 'u32[144,128]{1,0:T(1,128)}', space=vmem, size = 0x12000, scoped, tag = 'internal scratch']
  %s0 = inlined_call_operand.hbm [shape: f32[4,128], index: 0, kind: input, shape index: {}]
  %s1 = inlined_call_operand.hbm [shape: f32[4,128], index: 1, kind: input, shape index: {}]
  %s2 = inlined_call_operand.vmem [shape: f32[1,128], index: 2, kind: input, shape index: {}]
  %s3 = inlined_call_operand.vmem [shape: f32[1,128], index: 3, kind: input, shape index: {}]
  %s4 = inlined_call_operand.hbm [shape: f32[4,128], index: 4, kind: output, shape index: {}]
  %s5 = sld [smem:[#allocation0]]
  $region34: #{tpu_custom_call.1} parent=0
    _
  %s7 = ssub.s32 1, %s5
  %s8 = scalar_select 0, %s7, %s5
  $region1: #{tpu_custom_call.1} parent=0
    #allocation2 [shape = 'u8[2048]{0}', space=vmem, size = 0x800, scoped, tag = 'input window, operand 0, single buffered']
    #allocation3 [shape = 's32[1]{0}', space=sflag, size = 0x4, scoped, tag = 'scoped memory for tpu_custom_call.1']
    #allocation4 [shape = 's32[1]{0}', space=sflag, size = 0x4, scoped, tag = 'scoped memory for tpu_custom_call.1']
    #allocation5 [shape = 'u8[2048]{0}', space=vmem, size = 0x800, scoped, tag = 'input window, operand 1, single buffered']
    #allocation6 [shape = 's32[1]{0}', space=sflag, size = 0x4, scoped, tag = 'scoped memory for tpu_custom_call.1']
    #allocation7 [shape = 'u8[2048]{0}', space=vmem, size = 0x800, scoped, tag = 'output window, operand 0, single buffered']
    %9 = vsyncpa [#allocation3], 0
    %10 = vsyncpa [#allocation6], 0
    %11 = vsyncpa [#allocation4], 0
    // Predicated region
    $region2: #{tpu_custom_call.1} parent=1 // pred_check
      _
    $region3: #{tpu_custom_call.1} parent=1 // pred_check_branch
      %13 = sbr.rel (0) target = $region5
    $region4: #{tpu_custom_call.1} parent=1 // pred_region
      %s15 = ssub.s32 64, 64
      %16 = vsyncadd [#allocation3], %s15
      %s18 = sshll.u32 [#allocation2], 4
      %s19 = int_to_ptr.vmem [resolvable:$true] %s18
      %21 = dma.hbm_to_vmem [thread:$0]  %s0, 64, %s19, [#allocation3]
    $region5: #{tpu_custom_call.1} parent=1 // pred_fallthru
      _
    // Predicated region
    $region6: #{tpu_custom_call.1} parent=1 // pred_check
      _
    $region7: #{tpu_custom_call.1} parent=1 // pred_check_branch
      %23 = sbr.rel (0) target = $region9
    $region8: #{tpu_custom_call.1} parent=1 // pred_region
      %s25 = ssub.s32 64, 64
      %26 = vsyncadd [#allocation6], %s25
      %s28 = sshll.u32 [#allocation5], 4
      %s29 = int_to_ptr.vmem [resolvable:$true] %s28
      %31 = dma.hbm_to_vmem [thread:$0]  %s1, 64, %s29, [#allocation6]
    $region9: #{tpu_custom_call.1} parent=1 // pred_fallthru
      _
    // Predicated region
    $region10: #{tpu_custom_call.1} parent=1 // pred_check
      _
    $region11: #{tpu_custom_call.1} parent=1 // pred_check_branch
      %33 = sbr.rel (0) target = $region13
    $region12: #{tpu_custom_call.1} parent=1 // pred_region
      _
    $region13: #{tpu_custom_call.1} parent=1 // pred_fallthru
      _
    // Predicated region
    $region14: #{tpu_custom_call.1} parent=1 // pred_check
      _
    $region15: #{tpu_custom_call.1} parent=1 // pred_check_branch
      %35 = sbr.rel (0) target = $region17
    $region16: #{tpu_custom_call.1} parent=1 // pred_region
      _
    $region17: #{tpu_custom_call.1} parent=1 // pred_fallthru
      _
    // Predicated region
    $region18: #{tpu_custom_call.1} parent=1 // pred_check
      _
    $region19: #{tpu_custom_call.1} parent=1 // pred_check_branch
      %37 = sbr.rel (0) target = $region21
    $region20: #{tpu_custom_call.1} parent=1 // pred_region
      %38 = dma.done [#allocation3], 64
    $region21: #{tpu_custom_call.1} parent=1 // pred_fallthru
      _
    // Predicated region
    $region22: #{tpu_custom_call.1} parent=1 // pred_check
      _
    $region23: #{tpu_custom_call.1} parent=1 // pred_check_branch
      %40 = sbr.rel (0) target = $region25
    $region24: #{tpu_custom_call.1} parent=1 // pred_region
      %41 = dma.done [#allocation6], 64
    $region25: #{tpu_custom_call.1} parent=1 // pred_fallthru
      _
    %v42 = vld [vmem:[#allocation2] sm:$0xf]
    %v43 = vld [vmem:[#allocation5] sm:$0xf]
    %v44 = vld [vmem:[%s2] sm:$0x1]
    %v45 = vld [vmem:[%s3] sm:$0x1]
    %46 = vmatprep.subr.mxu0 0.0
    %v47 = vand.u32 %v43, 4294901760
    %48 = vmatpush1.xpose.msra.mxu0 %v47
    %49 = vmatprep.subr.mxu0 0.0
    %50 = vmatpush1.xpose.msra.mxu0 0.0
    %51 = vmatprep.subr.mxu0 0.0
    %52 = vmatpush1.xpose.msra.mxu0 0.0
    %53 = vmatprep.subr.mxu0 0.0
    %54 = vmatpush1.xpose.msra.mxu0 0.0
    %55 = vmatprep.subr.mxu0 0.0
    %56 = vmatpush1.xpose.msra.mxu0 0.0
    %57 = vmatprep.subr.mxu0 0.0
    %58 = vmatpush1.xpose.msra.mxu0 0.0
    %59 = vmatprep.subr.mxu0 0.0
    %60 = vmatpush1.xpose.msra.mxu0 0.0
    %61 = vmatprep.subr.mxu0 0.0
    %62 = vmatpush1.xpose.msra.mxu0 0.0
    %63 = vmatprep.subr.mxu0 0.0
    %64 = vmatpush1.xpose.msra.mxu0 0.0
    %65 = vmatprep.subr.mxu0 0.0
    %66 = vmatpush1.xpose.msra.mxu0 0.0
    %67 = vmatprep.subr.mxu0 0.0
    %68 = vmatpush1.xpose.msra.mxu0 0.0
    %69 = vmatprep.subr.mxu0 0.0
    %70 = vmatpush1.xpose.msra.mxu0 0.0
    %71 = vmatprep.subr.mxu0 0.0
    %72 = vmatpush1.xpose.msra.mxu0 0.0
    %73 = vmatprep.subr.mxu0 0.0
    %74 = vmatpush1.xpose.msra.mxu0 0.0
    %75 = vmatprep.subr.mxu0 0.0
    %76 = vmatpush1.xpose.msra.mxu0 0.0
    %77 = vmatprep.subr.mxu0 0.0
    %78 = vmatpush1.xpose.msra.mxu0 0.0
    %79 = vmatprep.subr.mxu0 0.0
    %80 = vmatpush1.xpose.msra.mxu0 0.0
    %81 = vmatprep.subr.mxu0 0.0
    %82 = vmatpush1.xpose.msra.mxu0 0.0
    %83 = vmatprep.subr.mxu0 0.0
    %84 = vmatpush1.xpose.msra.mxu0 0.0
    %85 = vmatprep.subr.mxu0 0.0
    %86 = vmatpush1.xpose.msra.mxu0 0.0
    %87 = vmatprep.subr.mxu0 0.0
    %88 = vmatpush1.xpose.msra.mxu0 0.0
    %89 = vmatprep.subr.mxu0 0.0
    %90 = vmatpush1.xpose.msra.mxu0 0.0
    %91 = vmatprep.subr.mxu0 0.0
    %92 = vmatpush1.xpose.msra.mxu0 0.0
    %93 = vmatprep.subr.mxu0 0.0
    %94 = vmatpush1.xpose.msra.mxu0 0.0
    %95 = vmatprep.subr.mxu0 0.0
    %96 = vmatpush1.xpose.msra.mxu0 0.0
    %97 = vmatprep.subr.mxu0 0.0
    %98 = vmatpush1.xpose.msra.mxu0 0.0
    %99 = vmatprep.subr.mxu0 0.0
    %100 = vmatpush1.xpose.msra.mxu0 0.0
    %101 = vmatprep.subr.mxu0 0.0
    %102 = vmatpush1.xpose.msra.mxu0 0.0
    %103 = vmatprep.subr.mxu0 0.0
    %104 = vmatpush1.xpose.msra.mxu0 0.0
    %105 = vmatprep.subr.mxu0 0.0
    %106 = vmatpush1.xpose.msra.mxu0 0.0
    %107 = vmatprep.subr.mxu0 0.0
    %108 = vmatpush1.xpose.msra.mxu0 0.0
    %109 = vmatprep.subr.mxu0 0.0
    %110 = vmatpush1.xpose.msra.mxu0 0.0
    %111 = vmatprep.mubr.f32.mxu0 0.0
    %v112 = vand.u32 %v42, 4294901760
    %v113 = vsub.f32 %v42, %v112
    %v114 = vand.u32 %v113, 4294901760
    %v115 = vsub.f32 %v113, %v114
    %v116 = vand.u32 %v115, 4294901760
    %117 = vmatmul.mubr.f32.gmra.mrb[0].mxu0 %v116
    %v118 = vpop.f32.mrb[0].mxu0
    %v119 = vadd.f32 0.0, %v118
    %v120 = vpop.f32.mrb[0].mxu0
    %121 = vdwg.mxu0
    %122 = vmatprep.subr.mxu0 0.0
    %v123 = vand.u32 %v43, 4294901760
    %v124 = vsub.f32 %v43, %v123
    %v125 = vand.u32 %v124, 4294901760
    %v126 = vsub.f32 %v124, %v125
    %v127 = vand.u32 %v126, 4294901760
    %128 = vmatpush1.xpose.msra.mxu0 %v127
    %129 = vmatprep.subr.mxu0 0.0
    %130 = vmatpush1.xpose.msra.mxu0 0.0
    %131 = vmatprep.subr.mxu0 0.0
    %132 = vmatpush1.xpose.msra.mxu0 0.0
    %133 = vmatprep.subr.mxu0 0.0
    %134 = vmatpush1.xpose.msra.mxu0 0.0
    %135 = vmatprep.subr.mxu0 0.0
    %136 = vmatpush1.xpose.msra.mxu0 0.0
    %137 = vmatprep.subr.mxu0 0.0
    %138 = vmatpush1.xpose.msra.mxu0 0.0
    %139 = vmatprep.subr.mxu0 0.0
    %140 = vmatpush1.xpose.msra.mxu0 0.0
    %141 = vmatprep.subr.mxu0 0.0
    %142 = vmatpush1.xpose.msra.mxu0 0.0
    %143 = vmatprep.subr.mxu0 0.0
    %144 = vmatpush1.xpose.msra.mxu0 0.0
    %145 = vmatprep.subr.mxu0 0.0
    %146 = vmatpush1.xpose.msra.mxu0 0.0
    %147 = vmatprep.subr.mxu0 0.0
    %148 = vmatpush1.xpose.msra.mxu0 0.0
    %149 = vmatprep.subr.mxu0 0.0
    %150 = vmatpush1.xpose.msra.mxu0 0.0
    %151 = vmatprep.subr.mxu0 0.0
    %152 = vmatpush1.xpose.msra.mxu0 0.0
    %153 = vmatprep.subr.mxu0 0.0
    %154 = vmatpush1.xpose.msra.mxu0 0.0
    %155 = vmatprep.subr.mxu0 0.0
    %156 = vmatpush1.xpose.msra.mxu0 0.0
    %157 = vmatprep.subr.mxu0 0.0
    %158 = vmatpush1.xpose.msra.mxu0 0.0
    %159 = vmatprep.subr.mxu0 0.0
    %160 = vmatpush1.xpose.msra.mxu0 0.0
    %161 = vmatprep.subr.mxu0 0.0
    %162 = vmatpush1.xpose.msra.mxu0 0.0
    %163 = vmatprep.subr.mxu0 0.0
    %164 = vmatpush1.xpose.msra.mxu0 0.0
    %165 = vmatprep.subr.mxu0 0.0
    %166 = vmatpush1.xpose.msra.mxu0 0.0
    %167 = vmatprep.subr.mxu0 0.0
    %168 = vmatpush1.xpose.msra.mxu0 0.0
    %169 = vmatprep.subr.mxu0 0.0
    %170 = vmatpush1.xpose.msra.mxu0 0.0
    %171 = vmatprep.subr.mxu0 0.0
    %172 = vmatpush1.xpose.msra.mxu0 0.0
    %173 = vmatprep.subr.mxu0 0.0
    %174 = vmatpush1.xpose.msra.mxu0 0.0
    %175 = vmatprep.subr.mxu0 0.0
    %176 = vmatpush1.xpose.msra.mxu0 0.0
    %177 = vmatprep.subr.mxu0 0.0
    %178 = vmatpush1.xpose.msra.mxu0 0.0
    %179 = vmatprep.subr.mxu0 0.0
    %180 = vmatpush1.xpose.msra.mxu0 0.0
    %181 = vmatprep.subr.mxu0 0.0
    %182 = vmatpush1.xpose.msra.mxu0 0.0
    %183 = vmatprep.subr.mxu0 0.0
    %184 = vmatpush1.xpose.msra.mxu0 0.0
    %185 = vmatprep.subr.mxu0 0.0
    %186 = vmatpush1.xpose.msra.mxu0 0.0
    %187 = vmatprep.subr.mxu0 0.0
    %188 = vmatpush1.xpose.msra.mxu0 0.0
    %189 = vmatprep.subr.mxu0 0.0
    %190 = vmatpush1.xpose.msra.mxu0 0.0
    %191 = vmatprep.mubr.f32.mxu0 0.0
    %v192 = vand.u32 %v42, 4294901760
    %193 = vmatmul.mubr.f32.gmra.mrb[0].mxu0 %v192
    %v194 = vpop.f32.mrb[0].mxu0
    %v195 = vadd.f32 %v119, %v194
    %v196 = vpop.f32.mrb[0].mxu0
    %197 = vdwg.mxu0
    %198 = vmatprep.subr.mxu0 0.0
    %v199 = vand.u32 %v43, 4294901760
    %v200 = vsub.f32 %v43, %v199
    %201 = vmatpush1.xpose.msra.mxu0 %v200
    %202 = vmatprep.subr.mxu0 0.0
    %203 = vmatpush1.xpose.msra.mxu0 0.0
    %204 = vmatprep.subr.mxu0 0.0
    %205 = vmatpush1.xpose.msra.mxu0 0.0
    %206 = vmatprep.subr.mxu0 0.0
    %207 = vmatpush1.xpose.msra.mxu0 0.0
    %208 = vmatprep.subr.mxu0 0.0
    %209 = vmatpush1.xpose.msra.mxu0 0.0
    %210 = vmatprep.subr.mxu0 0.0
    %211 = vmatpush1.xpose.msra.mxu0 0.0
    %212 = vmatprep.subr.mxu0 0.0
    %213 = vmatpush1.xpose.msra.mxu0 0.0
    %214 = vmatprep.subr.mxu0 0.0
    %215 = vmatpush1.xpose.msra.mxu0 0.0
    %216 = vmatprep.subr.mxu0 0.0
    %217 = vmatpush1.xpose.msra.mxu0 0.0
    %218 = vmatprep.subr.mxu0 0.0
    %219 = vmatpush1.xpose.msra.mxu0 0.0
    %220 = vmatprep.subr.mxu0 0.0
    %221 = vmatpush1.xpose.msra.mxu0 0.0
    %222 = vmatprep.subr.mxu0 0.0
    %223 = vmatpush1.xpose.msra.mxu0 0.0
    %224 = vmatprep.subr.mxu0 0.0
    %225 = vmatpush1.xpose.msra.mxu0 0.0
    %226 = vmatprep.subr.mxu0 0.0
    %227 = vmatpush1.xpose.msra.mxu0 0.0
    %228 = vmatprep.subr.mxu0 0.0
    %229 = vmatpush1.xpose.msra.mxu0 0.0
    %230 = vmatprep.subr.mxu0 0.0
    %231 = vmatpush1.xpose.msra.mxu0 0.0
    %232 = vmatprep.subr.mxu0 0.0
    %233 = vmatpush1.xpose.msra.mxu0 0.0
    %234 = vmatprep.subr.mxu0 0.0
    %235 = vmatpush1.xpose.msra.mxu0 0.0
    %236 = vmatprep.subr.mxu0 0.0
    %237 = vmatpush1.xpose.msra.mxu0 0.0
    %238 = vmatprep.subr.mxu0 0.0
    %239 = vmatpush1.xpose.msra.mxu0 0.0
    %240 = vmatprep.subr.mxu0 0.0
    %241 = vmatpush1.xpose.msra.mxu0 0.0
    %242 = vmatprep.subr.mxu0 0.0
    %243 = vmatpush1.xpose.msra.mxu0 0.0
    %244 = vmatprep.subr.mxu0 0.0
    %245 = vmatpush1.xpose.msra.mxu0 0.0
    %246 = vmatprep.subr.mxu0 0.0
    %247 = vmatpush1.xpose.msra.mxu0 0.0
    %248 = vmatprep.subr.mxu0 0.0
    %249 = vmatpush1.xpose.msra.mxu0 0.0
    %250 = vmatprep.subr.mxu0 0.0
    %251 = vmatpush1.xpose.msra.mxu0 0.0
    %252 = vmatprep.subr.mxu0 0.0
    %253 = vmatpush1.xpose.msra.mxu0 0.0
    %254 = vmatprep.subr.mxu0 0.0
    %255 = vmatpush1.xpose.msra.mxu0 0.0
    %256 = vmatprep.subr.mxu0 0.0
    %257 = vmatpush1.xpose.msra.mxu0 0.0
    %258 = vmatprep.subr.mxu0 0.0
    %259 = vmatpush1.xpose.msra.mxu0 0.0
    %260 = vmatprep.subr.mxu0 0.0
    %261 = vmatpush1.xpose.msra.mxu0 0.0
    %262 = vmatprep.subr.mxu0 0.0
    %263 = vmatpush1.xpose.msra.mxu0 0.0
    %264 = vmatprep.mubr.f32.mxu0 0.0
    %v265 = vand.u32 %v42, 4294901760
    %v266 = vsub.f32 %v42, %v265
    %267 = vmatmul.mubr.f32.gmra.mrb[0].mxu0 %v266
    %v268 = vpop.f32.mrb[0].mxu0
    %v269 = vadd.f32 %v195, %v268
    %v270 = vpop.f32.mrb[0].mxu0
    %271 = vdwg.mxu0
    %272 = vmatprep.subr.mxu0 0.0
    %v273 = vand.u32 %v43, 4294901760
    %274 = vmatpush1.xpose.msra.mxu0 %v273
    %275 = vmatprep.subr.mxu0 0.0
    %276 = vmatpush1.xpose.msra.mxu0 0.0
    %277 = vmatprep.subr.mxu0 0.0
    %278 = vmatpush1.xpose.msra.mxu0 0.0
    %279 = vmatprep.subr.mxu0 0.0
    %280 = vmatpush1.xpose.msra.mxu0 0.0
    %281 = vmatprep.subr.mxu0 0.0
    %282 = vmatpush1.xpose.msra.mxu0 0.0
    %283 = vmatprep.subr.mxu0 0.0
    %284 = vmatpush1.xpose.msra.mxu0 0.0
    %285 = vmatprep.subr.mxu0 0.0
    %286 = vmatpush1.xpose.msra.mxu0 0.0
    %287 = vmatprep.subr.mxu0 0.0
    %288 = vmatpush1.xpose.msra.mxu0 0.0
    %289 = vmatprep.subr.mxu0 0.0
    %290 = vmatpush1.xpose.msra.mxu0 0.0
    %291 = vmatprep.subr.mxu0 0.0
    %292 = vmatpush1.xpose.msra.mxu0 0.0
    %293 = vmatprep.subr.mxu0 0.0
    %294 = vmatpush1.xpose.msra.mxu0 0.0
    %295 = vmatprep.subr.mxu0 0.0
    %296 = vmatpush1.xpose.msra.mxu0 0.0
    %297 = vmatprep.subr.mxu0 0.0
    %298 = vmatpush1.xpose.msra.mxu0 0.0
    %299 = vmatprep.subr.mxu0 0.0
    %300 = vmatpush1.xpose.msra.mxu0 0.0
    %301 = vmatprep.subr.mxu0 0.0
    %302 = vmatpush1.xpose.msra.mxu0 0.0
    %303 = vmatprep.subr.mxu0 0.0
    %304 = vmatpush1.xpose.msra.mxu0 0.0
    %305 = vmatprep.subr.mxu0 0.0
    %306 = vmatpush1.xpose.msra.mxu0 0.0
    %307 = vmatprep.subr.mxu0 0.0
    %308 = vmatpush1.xpose.msra.mxu0 0.0
    %309 = vmatprep.subr.mxu0 0.0
    %310 = vmatpush1.xpose.msra.mxu0 0.0
    %311 = vmatprep.subr.mxu0 0.0
    %312 = vmatpush1.xpose.msra.mxu0 0.0
    %313 = vmatprep.subr.mxu0 0.0
    %314 = vmatpush1.xpose.msra.mxu0 0.0
    %315 = vmatprep.subr.mxu0 0.0
    %316 = vmatpush1.xpose.msra.mxu0 0.0
    %317 = vmatprep.subr.mxu0 0.0
    %318 = vmatpush1.xpose.msra.mxu0 0.0
    %319 = vmatprep.subr.mxu0 0.0
    %320 = vmatpush1.xpose.msra.mxu0 0.0
    %321 = vmatprep.subr.mxu0 0.0
    %322 = vmatpush1.xpose.msra.mxu0 0.0
    %323 = vmatprep.subr.mxu0 0.0
    %324 = vmatpush1.xpose.msra.mxu0 0.0
    %325 = vmatprep.subr.mxu0 0.0
    %326 = vmatpush1.xpose.msra.mxu0 0.0
    %327 = vmatprep.subr.mxu0 0.0
    %328 = vmatpush1.xpose.msra.mxu0 0.0
    %329 = vmatprep.subr.mxu0 0.0
    %330 = vmatpush1.xpose.msra.mxu0 0.0
    %331 = vmatprep.subr.mxu0 0.0
    %332 = vmatpush1.xpose.msra.mxu0 0.0
    %333 = vmatprep.subr.mxu0 0.0
    %334 = vmatpush1.xpose.msra.mxu0 0.0
    %335 = vmatprep.subr.mxu0 0.0
    %336 = vmatpush1.xpose.msra.mxu0 0.0
    %337 = vmatprep.mubr.f32.mxu0 0.0
    %v338 = vand.u32 %v42, 4294901760
    %v339 = vsub.f32 %v42, %v338
    %v340 = vand.u32 %v339, 4294901760
    %341 = vmatmul.mubr.f32.gmra.mrb[0].mxu0 %v340
    %v342 = vpop.f32.mrb[0].mxu0
    %v343 = vadd.f32 %v269, %v342
    %v344 = vpop.f32.mrb[0].mxu0
    %345 = vdwg.mxu0
    %346 = vmatprep.subr.mxu0 0.0
    %v347 = vand.u32 %v43, 4294901760
    %v348 = vsub.f32 %v43, %v347
    %v349 = vand.u32 %v348, 4294901760
    %350 = vmatpush1.xpose.msra.mxu0 %v349
    %351 = vmatprep.subr.mxu0 0.0
    %352 = vmatpush1.xpose.msra.mxu0 0.0
    %353 = vmatprep.subr.mxu0 0.0
    %354 = vmatpush1.xpose.msra.mxu0 0.0
    %355 = vmatprep.subr.mxu0 0.0
    %356 = vmatpush1.xpose.msra.mxu0 0.0
    %357 = vmatprep.subr.mxu0 0.0
    %358 = vmatpush1.xpose.msra.mxu0 0.0
    %359 = vmatprep.subr.mxu0 0.0
    %360 = vmatpush1.xpose.msra.mxu0 0.0
    %361 = vmatprep.subr.mxu0 0.0
    %362 = vmatpush1.xpose.msra.mxu0 0.0
    %363 = vmatprep.subr.mxu0 0.0
    %364 = vmatpush1.xpose.msra.mxu0 0.0
    %365 = vmatprep.subr.mxu0 0.0
    %366 = vmatpush1.xpose.msra.mxu0 0.0
    %367 = vmatprep.subr.mxu0 0.0
    %368 = vmatpush1.xpose.msra.mxu0 0.0
    %369 = vmatprep.subr.mxu0 0.0
    %370 = vmatpush1.xpose.msra.mxu0 0.0
    %371 = vmatprep.subr.mxu0 0.0
    %372 = vmatpush1.xpose.msra.mxu0 0.0
    %373 = vmatprep.subr.mxu0 0.0
    %374 = vmatpush1.xpose.msra.mxu0 0.0
    %375 = vmatprep.subr.mxu0 0.0
    %376 = vmatpush1.xpose.msra.mxu0 0.0
    %377 = vmatprep.subr.mxu0 0.0
    %378 = vmatpush1.xpose.msra.mxu0 0.0
    %379 = vmatprep.subr.mxu0 0.0
    %380 = vmatpush1.xpose.msra.mxu0 0.0
    %381 = vmatprep.subr.mxu0 0.0
    %382 = vmatpush1.xpose.msra.mxu0 0.0
    %383 = vmatprep.subr.mxu0 0.0
    %384 = vmatpush1.xpose.msra.mxu0 0.0
    %385 = vmatprep.subr.mxu0 0.0
    %386 = vmatpush1.xpose.msra.mxu0 0.0
    %387 = vmatprep.subr.mxu0 0.0
    %388 = vmatpush1.xpose.msra.mxu0 0.0
    %389 = vmatprep.subr.mxu0 0.0
    %390 = vmatpush1.xpose.msra.mxu0 0.0
    %391 = vmatprep.subr.mxu0 0.0
    %392 = vmatpush1.xpose.msra.mxu0 0.0
    %393 = vmatprep.subr.mxu0 0.0
    %394 = vmatpush1.xpose.msra.mxu0 0.0
    %395 = vmatprep.subr.mxu0 0.0
    %396 = vmatpush1.xpose.msra.mxu0 0.0
    %397 = vmatprep.subr.mxu0 0.0
    %398 = vmatpush1.xpose.msra.mxu0 0.0
    %399 = vmatprep.subr.mxu0 0.0
    %400 = vmatpush1.xpose.msra.mxu0 0.0
    %401 = vmatprep.subr.mxu0 0.0
    %402 = vmatpush1.xpose.msra.mxu0 0.0
    %403 = vmatprep.subr.mxu0 0.0
    %404 = vmatpush1.xpose.msra.mxu0 0.0
    %405 = vmatprep.subr.mxu0 0.0
    %406 = vmatpush1.xpose.msra.mxu0 0.0
    %407 = vmatprep.subr.mxu0 0.0
    %408 = vmatpush1.xpose.msra.mxu0 0.0
    %409 = vmatprep.subr.mxu0 0.0
    %410 = vmatpush1.xpose.msra.mxu0 0.0
    %411 = vmatprep.subr.mxu0 0.0
    %412 = vmatpush1.xpose.msra.mxu0 0.0
    %413 = vmatprep.mubr.f32.mxu0 0.0
    %v414 = vand.u32 %v42, 4294901760
    %415 = vmatmul.mubr.f32.gmra.mrb[0].mxu0 %v414
    %v416 = vpop.f32.mrb[0].mxu0
    %v417 = vadd.f32 %v343, %v416
    %v418 = vpop.f32.mrb[0].mxu0
    %419 = vdwg.mxu0
    %420 = vmatprep.subr.mxu0 0.0
    %v421 = vand.u32 %v43, 4294901760
    %422 = vmatpush1.xpose.msra.mxu0 %v421
    %423 = vmatprep.subr.mxu0 0.0
    %424 = vmatpush1.xpose.msra.mxu0 0.0
    %425 = vmatprep.subr.mxu0 0.0
    %426 = vmatpush1.xpose.msra.mxu0 0.0
    %427 = vmatprep.subr.mxu0 0.0
    %428 = vmatpush1.xpose.msra.mxu0 0.0
    %429 = vmatprep.subr.mxu0 0.0
    %430 = vmatpush1.xpose.msra.mxu0 0.0
    %431 = vmatprep.subr.mxu0 0.0
    %432 = vmatpush1.xpose.msra.mxu0 0.0
    %433 = vmatprep.subr.mxu0 0.0
    %434 = vmatpush1.xpose.msra.mxu0 0.0
    %435 = vmatprep.subr.mxu0 0.0
    %436 = vmatpush1.xpose.msra.mxu0 0.0
    %437 = vmatprep.subr.mxu0 0.0
    %438 = vmatpush1.xpose.msra.mxu0 0.0
    %439 = vmatprep.subr.mxu0 0.0
    %440 = vmatpush1.xpose.msra.mxu0 0.0
    %441 = vmatprep.subr.mxu0 0.0
    %442 = vmatpush1.xpose.msra.mxu0 0.0
    %443 = vmatprep.subr.mxu0 0.0
    %444 = vmatpush1.xpose.msra.mxu0 0.0
    %445 = vmatprep.subr.mxu0 0.0
    %446 = vmatpush1.xpose.msra.mxu0 0.0
    %447 = vmatprep.subr.mxu0 0.0
    %448 = vmatpush1.xpose.msra.mxu0 0.0
    %449 = vmatprep.subr.mxu0 0.0
    %450 = vmatpush1.xpose.msra.mxu0 0.0
    %451 = vmatprep.subr.mxu0 0.0
    %452 = vmatpush1.xpose.msra.mxu0 0.0
    %453 = vmatprep.subr.mxu0 0.0
    %454 = vmatpush1.xpose.msra.mxu0 0.0
    %455 = vmatprep.subr.mxu0 0.0
    %456 = vmatpush1.xpose.msra.mxu0 0.0
    %457 = vmatprep.subr.mxu0 0.0
    %458 = vmatpush1.xpose.msra.mxu0 0.0
    %459 = vmatprep.subr.mxu0 0.0
    %460 = vmatpush1.xpose.msra.mxu0 0.0
    %461 = vmatprep.subr.mxu0 0.0
    %462 = vmatpush1.xpose.msra.mxu0 0.0
    %463 = vmatprep.subr.mxu0 0.0
    %464 = vmatpush1.xpose.msra.mxu0 0.0
    %465 = vmatprep.subr.mxu0 0.0
    %466 = vmatpush1.xpose.msra.mxu0 0.0
    %467 = vmatprep.subr.mxu0 0.0
    %468 = vmatpush1.xpose.msra.mxu0 0.0
    %469 = vmatprep.subr.mxu0 0.0
    %470 = vmatpush1.xpose.msra.mxu0 0.0
    %471 = vmatprep.subr.mxu0 0.0
    %472 = vmatpush1.xpose.msra.mxu0 0.0
    %473 = vmatprep.subr.mxu0 0.0
    %474 = vmatpush1.xpose.msra.mxu0 0.0
    %475 = vmatprep.subr.mxu0 0.0
    %476 = vmatpush1.xpose.msra.mxu0 0.0
    %477 = vmatprep.subr.mxu0 0.0
    %478 = vmatpush1.xpose.msra.mxu0 0.0
    %479 = vmatprep.subr.mxu0 0.0
    %480 = vmatpush1.xpose.msra.mxu0 0.0
    %481 = vmatprep.subr.mxu0 0.0
    %482 = vmatpush1.xpose.msra.mxu0 0.0
    %483 = vmatprep.subr.mxu0 0.0
    %484 = vmatpush1.xpose.msra.mxu0 0.0
    %485 = vmatprep.mubr.f32.mxu0 0.0
    %v486 = vand.u32 %v42, 4294901760
    %487 = vmatmul.mubr.f32.gmra.mrb[0].mxu0 %v486
    %v488 = vpop.f32.mrb[0].mxu0
    %v489 = vadd.f32 %v417, %v488
    %v490 = vpop.f32.mrb[0].mxu0
    %491 = vdwg.mxu0
    %v492 = vmul.f32 %v42, %v42
    %493 = vmatprep.subr.mxu0 0.0
    %v494 = vand.u32 %v43, 4294901760
    %495 = vmatpush1.xpose.msra.mxu0 %v494
    %496 = vmatprep.subr.mxu0 0.0
    %497 = vmatpush1.xpose.msra.mxu0 0.0
    %498 = vmatprep.subr.mxu0 0.0
    %499 = vmatpush1.xpose.msra.mxu0 0.0
    %500 = vmatprep.subr.mxu0 0.0
    %501 = vmatpush1.xpose.msra.mxu0 0.0
    %502 = vmatprep.subr.mxu0 0.0
    %503 = vmatpush1.xpose.msra.mxu0 0.0
    %504 = vmatprep.subr.mxu0 0.0
    %505 = vmatpush1.xpose.msra.mxu0 0.0
    %506 = vmatprep.subr.mxu0 0.0
    %507 = vmatpush1.xpose.msra.mxu0 0.0
    %508 = vmatprep.subr.mxu0 0.0
    %509 = vmatpush1.xpose.msra.mxu0 0.0
    %510 = vmatprep.subr.mxu0 0.0
    %511 = vmatpush1.xpose.msra.mxu0 0.0
    %512 = vmatprep.subr.mxu0 0.0
    %513 = vmatpush1.xpose.msra.mxu0 0.0
    %514 = vmatprep.subr.mxu0 0.0
    %515 = vmatpush1.xpose.msra.mxu0 0.0
    %516 = vmatprep.subr.mxu0 0.0
    %517 = vmatpush1.xpose.msra.mxu0 0.0
    %518 = vmatprep.subr.mxu0 0.0
    %519 = vmatpush1.xpose.msra.mxu0 0.0
    %520 = vmatprep.subr.mxu0 0.0
    %521 = vmatpush1.xpose.msra.mxu0 0.0
    %522 = vmatprep.subr.mxu0 0.0
    %523 = vmatpush1.xpose.msra.mxu0 0.0
    %524 = vmatprep.subr.mxu0 0.0
    %525 = vmatpush1.xpose.msra.mxu0 0.0
    %526 = vmatprep.subr.mxu0 0.0
    %527 = vmatpush1.xpose.msra.mxu0 0.0
    %528 = vmatprep.subr.mxu0 0.0
    %529 = vmatpush1.xpose.msra.mxu0 0.0
    %530 = vmatprep.subr.mxu0 0.0
    %531 = vmatpush1.xpose.msra.mxu0 0.0
    %532 = vmatprep.subr.mxu0 0.0
    %533 = vmatpush1.xpose.msra.mxu0 0.0
    %534 = vmatprep.subr.mxu0 0.0
    %535 = vmatpush1.xpose.msra.mxu0 0.0
    %536 = vmatprep.subr.mxu0 0.0
    %537 = vmatpush1.xpose.msra.mxu0 0.0
    %538 = vmatprep.subr.mxu0 0.0
    %539 = vmatpush1.xpose.msra.mxu0 0.0
    %540 = vmatprep.subr.mxu0 0.0
    %541 = vmatpush1.xpose.msra.mxu0 0.0
    %542 = vmatprep.subr.mxu0 0.0
    %543 = vmatpush1.xpose.msra.mxu0 0.0
    %544 = vmatprep.subr.mxu0 0.0
    %545 = vmatpush1.xpose.msra.mxu0 0.0
    %546 = vmatprep.subr.mxu0 0.0
    %547 = vmatpush1.xpose.msra.mxu0 0.0
    %548 = vmatprep.subr.mxu0 0.0
    %549 = vmatpush1.xpose.msra.mxu0 0.0
    %550 = vmatprep.subr.mxu0 0.0
    %551 = vmatpush1.xpose.msra.mxu0 0.0
    %552 = vmatprep.subr.mxu0 0.0
    %553 = vmatpush1.xpose.msra.mxu0 0.0
    %554 = vmatprep.subr.mxu0 0.0
    %555 = vmatpush1.xpose.msra.mxu0 0.0
    %556 = vmatprep.subr.mxu0 0.0
    %557 = vmatpush1.xpose.msra.mxu0 0.0
    %558 = vmatprep.mubr.f32.mxu0 0.0
    %v559 = vand.u32 %v492, 4294901760
    %v560 = vsub.f32 %v492, %v559
    %v561 = vand.u32 %v560, 4294901760
    %v562 = vsub.f32 %v560, %v561
    %v563 = vand.u32 %v562, 4294901760
    %564 = vmatmul.mubr.f32.gmra.mrb[0].mxu0 %v563
    %v565 = vpop.f32.mrb[0].mxu0
    %v566 = vadd.f32 0.0, %v565
    %v567 = vpop.f32.mrb[0].mxu0
    %568 = vdwg.mxu0
    %569 = vmatprep.subr.mxu0 0.0
    %v570 = vand.u32 %v43, 4294901760
    %v571 = vsub.f32 %v43, %v570
    %v572 = vand.u32 %v571, 4294901760
    %v573 = vsub.f32 %v571, %v572
    %v574 = vand.u32 %v573, 4294901760
    %575 = vmatpush1.xpose.msra.mxu0 %v574
    %576 = vmatprep.subr.mxu0 0.0
    %577 = vmatpush1.xpose.msra.mxu0 0.0
    %578 = vmatprep.subr.mxu0 0.0
    %579 = vmatpush1.xpose.msra.mxu0 0.0
    %580 = vmatprep.subr.mxu0 0.0
    %581 = vmatpush1.xpose.msra.mxu0 0.0
    %582 = vmatprep.subr.mxu0 0.0
    %583 = vmatpush1.xpose.msra.mxu0 0.0
    %584 = vmatprep.subr.mxu0 0.0
    %585 = vmatpush1.xpose.msra.mxu0 0.0
    %586 = vmatprep.subr.mxu0 0.0
    %587 = vmatpush1.xpose.msra.mxu0 0.0
    %588 = vmatprep.subr.mxu0 0.0
    %589 = vmatpush1.xpose.msra.mxu0 0.0
    %590 = vmatprep.subr.mxu0 0.0
    %591 = vmatpush1.xpose.msra.mxu0 0.0
    %592 = vmatprep.subr.mxu0 0.0
    %593 = vmatpush1.xpose.msra.mxu0 0.0
    %594 = vmatprep.subr.mxu0 0.0
    %595 = vmatpush1.xpose.msra.mxu0 0.0
    %596 = vmatprep.subr.mxu0 0.0
    %597 = vmatpush1.xpose.msra.mxu0 0.0
    %598 = vmatprep.subr.mxu0 0.0
    %599 = vmatpush1.xpose.msra.mxu0 0.0
    %600 = vmatprep.subr.mxu0 0.0
    %601 = vmatpush1.xpose.msra.mxu0 0.0
    %602 = vmatprep.subr.mxu0 0.0
    %603 = vmatpush1.xpose.msra.mxu0 0.0
    %604 = vmatprep.subr.mxu0 0.0
    %605 = vmatpush1.xpose.msra.mxu0 0.0
    %606 = vmatprep.subr.mxu0 0.0
    %607 = vmatpush1.xpose.msra.mxu0 0.0
    %608 = vmatprep.subr.mxu0 0.0
    %609 = vmatpush1.xpose.msra.mxu0 0.0
    %610 = vmatprep.subr.mxu0 0.0
    %611 = vmatpush1.xpose.msra.mxu0 0.0
    %612 = vmatprep.subr.mxu0 0.0
    %613 = vmatpush1.xpose.msra.mxu0 0.0
    %614 = vmatprep.subr.mxu0 0.0
    %615 = vmatpush1.xpose.msra.mxu0 0.0
    %616 = vmatprep.subr.mxu0 0.0
    %617 = vmatpush1.xpose.msra.mxu0 0.0
    %618 = vmatprep.subr.mxu0 0.0
    %619 = vmatpush1.xpose.msra.mxu0 0.0
    %620 = vmatprep.subr.mxu0 0.0
    %621 = vmatpush1.xpose.msra.mxu0 0.0
    %622 = vmatprep.subr.mxu0 0.0
    %623 = vmatpush1.xpose.msra.mxu0 0.0
    %624 = vmatprep.subr.mxu0 0.0
    %625 = vmatpush1.xpose.msra.mxu0 0.0
    %626 = vmatprep.subr.mxu0 0.0
    %627 = vmatpush1.xpose.msra.mxu0 0.0
    %628 = vmatprep.subr.mxu0 0.0
    %629 = vmatpush1.xpose.msra.mxu0 0.0
    %630 = vmatprep.subr.mxu0 0.0
    %631 = vmatpush1.xpose.msra.mxu0 0.0
    %632 = vmatprep.subr.mxu0 0.0
    %633 = vmatpush1.xpose.msra.mxu0 0.0
    %634 = vmatprep.subr.mxu0 0.0
    %635 = vmatpush1.xpose.msra.mxu0 0.0
    %636 = vmatprep.subr.mxu0 0.0
    %637 = vmatpush1.xpose.msra.mxu0 0.0
    %638 = vmatprep.mubr.f32.mxu0 0.0
    %v639 = vand.u32 %v492, 4294901760
    %640 = vmatmul.mubr.f32.gmra.mrb[0].mxu0 %v639
    %v641 = vpop.f32.mrb[0].mxu0
    %v642 = vadd.f32 %v566, %v641
    %v643 = vpop.f32.mrb[0].mxu0
    %644 = vdwg.mxu0
    %645 = vmatprep.subr.mxu0 0.0
    %v646 = vand.u32 %v43, 4294901760
    %v647 = vsub.f32 %v43, %v646
    %648 = vmatpush1.xpose.msra.mxu0 %v647
    %649 = vmatprep.subr.mxu0 0.0
    %650 = vmatpush1.xpose.msra.mxu0 0.0
    %651 = vmatprep.subr.mxu0 0.0
    %652 = vmatpush1.xpose.msra.mxu0 0.0
    %653 = vmatprep.subr.mxu0 0.0
    %654 = vmatpush1.xpose.msra.mxu0 0.0
    %655 = vmatprep.subr.mxu0 0.0
    %656 = vmatpush1.xpose.msra.mxu0 0.0
    %657 = vmatprep.subr.mxu0 0.0
    %658 = vmatpush1.xpose.msra.mxu0 0.0
    %659 = vmatprep.subr.mxu0 0.0
    %660 = vmatpush1.xpose.msra.mxu0 0.0
    %661 = vmatprep.subr.mxu0 0.0
    %662 = vmatpush1.xpose.msra.mxu0 0.0
    %663 = vmatprep.subr.mxu0 0.0
    %664 = vmatpush1.xpose.msra.mxu0 0.0
    %665 = vmatprep.subr.mxu0 0.0
    %666 = vmatpush1.xpose.msra.mxu0 0.0
    %667 = vmatprep.subr.mxu0 0.0
    %668 = vmatpush1.xpose.msra.mxu0 0.0
    %669 = vmatprep.subr.mxu0 0.0
    %670 = vmatpush1.xpose.msra.mxu0 0.0
    %671 = vmatprep.subr.mxu0 0.0
    %672 = vmatpush1.xpose.msra.mxu0 0.0
    %673 = vmatprep.subr.mxu0 0.0
    %674 = vmatpush1.xpose.msra.mxu0 0.0
    %675 = vmatprep.subr.mxu0 0.0
    %676 = vmatpush1.xpose.msra.mxu0 0.0
    %677 = vmatprep.subr.mxu0 0.0
    %678 = vmatpush1.xpose.msra.mxu0 0.0
    %679 = vmatprep.subr.mxu0 0.0
    %680 = vmatpush1.xpose.msra.mxu0 0.0
    %681 = vmatprep.subr.mxu0 0.0
    %682 = vmatpush1.xpose.msra.mxu0 0.0
    %683 = vmatprep.subr.mxu0 0.0
    %684 = vmatpush1.xpose.msra.mxu0 0.0
    %685 = vmatprep.subr.mxu0 0.0
    %686 = vmatpush1.xpose.msra.mxu0 0.0
    %687 = vmatprep.subr.mxu0 0.0
    %688 = vmatpush1.xpose.msra.mxu0 0.0
    %689 = vmatprep.subr.mxu0 0.0
    %690 = vmatpush1.xpose.msra.mxu0 0.0
    %691 = vmatprep.subr.mxu0 0.0
    %692 = vmatpush1.xpose.msra.mxu0 0.0
    %693 = vmatprep.subr.mxu0 0.0
    %694 = vmatpush1.xpose.msra.mxu0 0.0
    %695 = vmatprep.subr.mxu0 0.0
    %696 = vmatpush1.xpose.msra.mxu0 0.0
    %697 = vmatprep.subr.mxu0 0.0
    %698 = vmatpush1.xpose.msra.mxu0 0.0
    %699 = vmatprep.subr.mxu0 0.0
    %700 = vmatpush1.xpose.msra.mxu0 0.0
    %701 = vmatprep.subr.mxu0 0.0
    %702 = vmatpush1.xpose.msra.mxu0 0.0
    %703 = vmatprep.subr.mxu0 0.0
    %704 = vmatpush1.xpose.msra.mxu0 0.0
    %705 = vmatprep.subr.mxu0 0.0
    %706 = vmatpush1.xpose.msra.mxu0 0.0
    %707 = vmatprep.subr.mxu0 0.0
    %708 = vmatpush1.xpose.msra.mxu0 0.0
    %709 = vmatprep.subr.mxu0 0.0
    %710 = vmatpush1.xpose.msra.mxu0 0.0
    %711 = vmatprep.mubr.f32.mxu0 0.0
    %v712 = vand.u32 %v492, 4294901760
    %v713 = vsub.f32 %v492, %v712
    %714 = vmatmul.mubr.f32.gmra.mrb[0].mxu0 %v713
    %v715 = vpop.f32.mrb[0].mxu0
    %v716 = vadd.f32 %v642, %v715
    %v717 = vpop.f32.mrb[0].mxu0
    %718 = vdwg.mxu0
    %719 = vmatprep.subr.mxu0 0.0
    %v720 = vand.u32 %v43, 4294901760
    %721 = vmatpush1.xpose.msra.mxu0 %v720
    %722 = vmatprep.subr.mxu0 0.0
    %723 = vmatpush1.xpose.msra.mxu0 0.0
    %724 = vmatprep.subr.mxu0 0.0
    %725 = vmatpush1.xpose.msra.mxu0 0.0
    %726 = vmatprep.subr.mxu0 0.0
    %727 = vmatpush1.xpose.msra.mxu0 0.0
    %728 = vmatprep.subr.mxu0 0.0
    %729 = vmatpush1.xpose.msra.mxu0 0.0
    %730 = vmatprep.subr.mxu0 0.0
    %731 = vmatpush1.xpose.msra.mxu0 0.0
    %732 = vmatprep.subr.mxu0 0.0
    %733 = vmatpush1.xpose.msra.mxu0 0.0
    %734 = vmatprep.subr.mxu0 0.0
    %735 = vmatpush1.xpose.msra.mxu0 0.0
    %736 = vmatprep.subr.mxu0 0.0
    %737 = vmatpush1.xpose.msra.mxu0 0.0
    %738 = vmatprep.subr.mxu0 0.0
    %739 = vmatpush1.xpose.msra.mxu0 0.0
    %740 = vmatprep.subr.mxu0 0.0
    %741 = vmatpush1.xpose.msra.mxu0 0.0
    %742 = vmatprep.subr.mxu0 0.0
    %743 = vmatpush1.xpose.msra.mxu0 0.0
    %744 = vmatprep.subr.mxu0 0.0
    %745 = vmatpush1.xpose.msra.mxu0 0.0
    %746 = vmatprep.subr.mxu0 0.0
    %747 = vmatpush1.xpose.msra.mxu0 0.0
    %748 = vmatprep.subr.mxu0 0.0
    %749 = vmatpush1.xpose.msra.mxu0 0.0
    %750 = vmatprep.subr.mxu0 0.0
    %751 = vmatpush1.xpose.msra.mxu0 0.0
    %752 = vmatprep.subr.mxu0 0.0
    %753 = vmatpush1.xpose.msra.mxu0 0.0
    %754 = vmatprep.subr.mxu0 0.0
    %755 = vmatpush1.xpose.msra.mxu0 0.0
    %756 = vmatprep.subr.mxu0 0.0
    %757 = vmatpush1.xpose.msra.mxu0 0.0
    %758 = vmatprep.subr.mxu0 0.0
    %759 = vmatpush1.xpose.msra.mxu0 0.0
    %760 = vmatprep.subr.mxu0 0.0
    %761 = vmatpush1.xpose.msra.mxu0 0.0
    %762 = vmatprep.subr.mxu0 0.0
    %763 = vmatpush1.xpose.msra.mxu0 0.0
    %764 = vmatprep.subr.mxu0 0.0
    %765 = vmatpush1.xpose.msra.mxu0 0.0
    %766 = vmatprep.subr.mxu0 0.0
    %767 = vmatpush1.xpose.msra.mxu0 0.0
    %768 = vmatprep.subr.mxu0 0.0
    %769 = vmatpush1.xpose.msra.mxu0 0.0
    %770 = vmatprep.subr.mxu0 0.0
    %771 = vmatpush1.xpose.msra.mxu0 0.0
    %772 = vmatprep.subr.mxu0 0.0
    %773 = vmatpush1.xpose.msra.mxu0 0.0
    %774 = vmatprep.subr.mxu0 0.0
    %775 = vmatpush1.xpose.msra.mxu0 0.0
    %776 = vmatprep.subr.mxu0 0.0
    %777 = vmatpush1.xpose.msra.mxu0 0.0
    %778 = vmatprep.subr.mxu0 0.0
    %779 = vmatpush1.xpose.msra.mxu0 0.0
    %780 = vmatprep.subr.mxu0 0.0
    %781 = vmatpush1.xpose.msra.mxu0 0.0
    %782 = vmatprep.subr.mxu0 0.0
    %783 = vmatpush1.xpose.msra.mxu0 0.0
    %784 = vmatprep.mubr.f32.mxu0 0.0
    %v785 = vand.u32 %v492, 4294901760
    %v786 = vsub.f32 %v492, %v785
    %v787 = vand.u32 %v786, 4294901760
    %788 = vmatmul.mubr.f32.gmra.mrb[0].mxu0 %v787
    %v789 = vpop.f32.mrb[0].mxu0
    %v790 = vadd.f32 %v716, %v789
    %v791 = vpop.f32.mrb[0].mxu0
    %792 = vdwg.mxu0
    %793 = vmatprep.subr.mxu0 0.0
    %v794 = vand.u32 %v43, 4294901760
    %v795 = vsub.f32 %v43, %v794
    %v796 = vand.u32 %v795, 4294901760
    %797 = vmatpush1.xpose.msra.mxu0 %v796
    %798 = vmatprep.subr.mxu0 0.0
    %799 = vmatpush1.xpose.msra.mxu0 0.0
    %800 = vmatprep.subr.mxu0 0.0
    %801 = vmatpush1.xpose.msra.mxu0 0.0
    %802 = vmatprep.subr.mxu0 0.0
    %803 = vmatpush1.xpose.msra.mxu0 0.0
    %804 = vmatprep.subr.mxu0 0.0
    %805 = vmatpush1.xpose.msra.mxu0 0.0
    %806 = vmatprep.subr.mxu0 0.0
    %807 = vmatpush1.xpose.msra.mxu0 0.0
    %808 = vmatprep.subr.mxu0 0.0
    %809 = vmatpush1.xpose.msra.mxu0 0.0
    %810 = vmatprep.subr.mxu0 0.0
    %811 = vmatpush1.xpose.msra.mxu0 0.0
    %812 = vmatprep.subr.mxu0 0.0
    %813 = vmatpush1.xpose.msra.mxu0 0.0
    %814 = vmatprep.subr.mxu0 0.0
    %815 = vmatpush1.xpose.msra.mxu0 0.0
    %816 = vmatprep.subr.mxu0 0.0
    %817 = vmatpush1.xpose.msra.mxu0 0.0
    %818 = vmatprep.subr.mxu0 0.0
    %819 = vmatpush1.xpose.msra.mxu0 0.0
    %820 = vmatprep.subr.mxu0 0.0
    %821 = vmatpush1.xpose.msra.mxu0 0.0
    %822 = vmatprep.subr.mxu0 0.0
    %823 = vmatpush1.xpose.msra.mxu0 0.0
    %824 = vmatprep.subr.mxu0 0.0
    %825 = vmatpush1.xpose.msra.mxu0 0.0
    %826 = vmatprep.subr.mxu0 0.0
    %827 = vmatpush1.xpose.msra.mxu0 0.0
    %828 = vmatprep.subr.mxu0 0.0
    %829 = vmatpush1.xpose.msra.mxu0 0.0
    %830 = vmatprep.subr.mxu0 0.0
    %831 = vmatpush1.xpose.msra.mxu0 0.0
    %832 = vmatprep.subr.mxu0 0.0
    %833 = vmatpush1.xpose.msra.mxu0 0.0
    %834 = vmatprep.subr.mxu0 0.0
    %835 = vmatpush1.xpose.msra.mxu0 0.0
    %836 = vmatprep.subr.mxu0 0.0
    %837 = vmatpush1.xpose.msra.mxu0 0.0
    %838 = vmatprep.subr.mxu0 0.0
    %839 = vmatpush1.xpose.msra.mxu0 0.0
    %840 = vmatprep.subr.mxu0 0.0
    %841 = vmatpush1.xpose.msra.mxu0 0.0
    %842 = vmatprep.subr.mxu0 0.0
    %843 = vmatpush1.xpose.msra.mxu0 0.0
    %844 = vmatprep.subr.mxu0 0.0
    %845 = vmatpush1.xpose.msra.mxu0 0.0
    %846 = vmatprep.subr.mxu0 0.0
    %847 = vmatpush1.xpose.msra.mxu0 0.0
    %848 = vmatprep.subr.mxu0 0.0
    %849 = vmatpush1.xpose.msra.mxu0 0.0
    %850 = vmatprep.subr.mxu0 0.0
    %851 = vmatpush1.xpose.msra.mxu0 0.0
    %852 = vmatprep.subr.mxu0 0.0
    %853 = vmatpush1.xpose.msra.mxu0 0.0
    %854 = vmatprep.subr.mxu0 0.0
    %855 = vmatpush1.xpose.msra.mxu0 0.0
    %856 = vmatprep.subr.mxu0 0.0
    %857 = vmatpush1.xpose.msra.mxu0 0.0
    %858 = vmatprep.subr.mxu0 0.0
    %859 = vmatpush1.xpose.msra.mxu0 0.0
    %860 = vmatprep.mubr.f32.mxu0 0.0
    %v861 = vand.u32 %v492, 4294901760
    %862 = vmatmul.mubr.f32.gmra.mrb[0].mxu0 %v861
    %v863 = vpop.f32.mrb[0].mxu0
    %v864 = vadd.f32 %v790, %v863
    %v865 = vpop.f32.mrb[0].mxu0
    %866 = vdwg.mxu0
    %867 = vmatprep.subr.mxu0 0.0
    %v868 = vand.u32 %v43, 4294901760
    %869 = vmatpush1.xpose.msra.mxu0 %v868
    %870 = vmatprep.subr.mxu0 0.0
    %871 = vmatpush1.xpose.msra.mxu0 0.0
    %872 = vmatprep.subr.mxu0 0.0
    %873 = vmatpush1.xpose.msra.mxu0 0.0
    %874 = vmatprep.subr.mxu0 0.0
    %875 = vmatpush1.xpose.msra.mxu0 0.0
    %876 = vmatprep.subr.mxu0 0.0
    %877 = vmatpush1.xpose.msra.mxu0 0.0
    %878 = vmatprep.subr.mxu0 0.0
    %879 = vmatpush1.xpose.msra.mxu0 0.0
    %880 = vmatprep.subr.mxu0 0.0
    %881 = vmatpush1.xpose.msra.mxu0 0.0
    %882 = vmatprep.subr.mxu0 0.0
    %883 = vmatpush1.xpose.msra.mxu0 0.0
    %884 = vmatprep.subr.mxu0 0.0
    %885 = vmatpush1.xpose.msra.mxu0 0.0
    %886 = vmatprep.subr.mxu0 0.0
    %887 = vmatpush1.xpose.msra.mxu0 0.0
    %888 = vmatprep.subr.mxu0 0.0
    %889 = vmatpush1.xpose.msra.mxu0 0.0
    %890 = vmatprep.subr.mxu0 0.0
    %891 = vmatpush1.xpose.msra.mxu0 0.0
    %892 = vmatprep.subr.mxu0 0.0
    %893 = vmatpush1.xpose.msra.mxu0 0.0
    %894 = vmatprep.subr.mxu0 0.0
    %895 = vmatpush1.xpose.msra.mxu0 0.0
    %896 = vmatprep.subr.mxu0 0.0
    %897 = vmatpush1.xpose.msra.mxu0 0.0
    %898 = vmatprep.subr.mxu0 0.0
    %899 = vmatpush1.xpose.msra.mxu0 0.0
    %900 = vmatprep.subr.mxu0 0.0
    %901 = vmatpush1.xpose.msra.mxu0 0.0
    %902 = vmatprep.subr.mxu0 0.0
    %903 = vmatpush1.xpose.msra.mxu0 0.0
    %904 = vmatprep.subr.mxu0 0.0
    %905 = vmatpush1.xpose.msra.mxu0 0.0
    %906 = vmatprep.subr.mxu0 0.0
    %907 = vmatpush1.xpose.msra.mxu0 0.0
    %908 = vmatprep.subr.mxu0 0.0
    %909 = vmatpush1.xpose.msra.mxu0 0.0
    %910 = vmatprep.subr.mxu0 0.0
    %911 = vmatpush1.xpose.msra.mxu0 0.0
    %912 = vmatprep.subr.mxu0 0.0
    %913 = vmatpush1.xpose.msra.mxu0 0.0
    %914 = vmatprep.subr.mxu0 0.0
    %915 = vmatpush1.xpose.msra.mxu0 0.0
    %916 = vmatprep.subr.mxu0 0.0
    %917 = vmatpush1.xpose.msra.mxu0 0.0
    %918 = vmatprep.subr.mxu0 0.0
    %919 = vmatpush1.xpose.msra.mxu0 0.0
    %920 = vmatprep.subr.mxu0 0.0
    %921 = vmatpush1.xpose.msra.mxu0 0.0
    %922 = vmatprep.subr.mxu0 0.0
    %923 = vmatpush1.xpose.msra.mxu0 0.0
    %924 = vmatprep.subr.mxu0 0.0
    %925 = vmatpush1.xpose.msra.mxu0 0.0
    %926 = vmatprep.subr.mxu0 0.0
    %927 = vmatpush1.xpose.msra.mxu0 0.0
    %928 = vmatprep.subr.mxu0 0.0
    %929 = vmatpush1.xpose.msra.mxu0 0.0
    %930 = vmatprep.subr.mxu0 0.0
    %931 = vmatpush1.xpose.msra.mxu0 0.0
    %932 = vmatprep.mubr.f32.mxu0 0.0
    %v933 = vand.u32 %v492, 4294901760
    %934 = vmatmul.mubr.f32.gmra.mrb[0].mxu0 %v933
    %v935 = vpop.f32.mrb[0].mxu0
    %v936 = vadd.f32 %v864, %v935
    %v937 = vpop.f32.mrb[0].mxu0
    %938 = vdwg.mxu0
    %v939 = vmul.f32 %v489, 0.03125
    %v940 = vmul.f32 %v489, %v939
    %v941 = vsub.f32 %v936, %v940
    %v942 = vmul.f32 %v941, 0.032258064
    %v943 = vmax.f32 %v942, 0.0
    %v944 = vrsqrt.pop %v943
    %v945 = vmul.f32 %v943, %v944
    %vm946 = vcmp.eq.f32.partialorder %v943, inf
    %v947 = vsel %vm946, %v943, %v945
    %vm948 = vcmp.eq.f32.partialorder %v943, 0.0
    %v949 = vand.u32 %v943, 2147483648
    %v950 = vsel %vm948, %v949, %v947
    %v951 = vadd.f32 %v950, 1e-06
    %v952 = vrcp.pop %v951
    %v953 = vmul.f32 %v951, %v952
    %v954 = vsub.f32 2.0, %v953
    %v955 = vmul.f32 %v952, %v954
    %v956 = vsub.f32 0.0, %v939
    %v957 = vmul.f32 %v956, %v955
    %vm958 = vcmask 31744
    %v960 = vsel %vm958, %v955, 0
    %vm962 = vcmask 1043456
    %v964 = vsel %vm962, %v43, 0
    %966 = vmatprep.subr.mxu0 0.0
    %v967 = vand.u32 %v964, 4294901760
    %968 = vmatpush1.msra.mxu0 %v967
    %969 = vmatprep.subr.mxu0 0.0
    %970 = vmatpush1.msra.mxu0 0.0
    %971 = vmatprep.subr.mxu0 0.0
    %972 = vmatpush1.msra.mxu0 0.0
    %973 = vmatprep.subr.mxu0 0.0
    %974 = vmatpush1.msra.mxu0 0.0
    %975 = vmatprep.subr.mxu0 0.0
    %976 = vmatpush1.msra.mxu0 0.0
    %977 = vmatprep.subr.mxu0 0.0
    %978 = vmatpush1.msra.mxu0 0.0
    %979 = vmatprep.subr.mxu0 0.0
    %980 = vmatpush1.msra.mxu0 0.0
    %981 = vmatprep.subr.mxu0 0.0
    %982 = vmatpush1.msra.mxu0 0.0
    %983 = vmatprep.subr.mxu0 0.0
    %984 = vmatpush1.msra.mxu0 0.0
    %985 = vmatprep.subr.mxu0 0.0
    %986 = vmatpush1.msra.mxu0 0.0
    %987 = vmatprep.subr.mxu0 0.0
    %988 = vmatpush1.msra.mxu0 0.0
    %989 = vmatprep.subr.mxu0 0.0
    %990 = vmatpush1.msra.mxu0 0.0
    %991 = vmatprep.subr.mxu0 0.0
    %992 = vmatpush1.msra.mxu0 0.0
    %993 = vmatprep.subr.mxu0 0.0
    %994 = vmatpush1.msra.mxu0 0.0
    %995 = vmatprep.subr.mxu0 0.0
    %996 = vmatpush1.msra.mxu0 0.0
    %997 = vmatprep.subr.mxu0 0.0
    %998 = vmatpush1.msra.mxu0 0.0
    %999 = vmatprep.subr.mxu0 0.0
    %1000 = vmatpush1.msra.mxu0 0.0
    %1001 = vmatprep.subr.mxu0 0.0
    %1002 = vmatpush1.msra.mxu0 0.0
    %1003 = vmatprep.subr.mxu0 0.0
    %1004 = vmatpush1.msra.mxu0 0.0
    %1005 = vmatprep.subr.mxu0 0.0
    %1006 = vmatpush1.msra.mxu0 0.0
    %1007 = vmatprep.subr.mxu0 0.0
    %1008 = vmatpush1.msra.mxu0 0.0
    %1009 = vmatprep.subr.mxu0 0.0
    %1010 = vmatpush1.msra.mxu0 0.0
    %1011 = vmatprep.subr.mxu0 0.0
    %1012 = vmatpush1.msra.mxu0 0.0
    %1013 = vmatprep.subr.mxu0 0.0
    %1014 = vmatpush1.msra.mxu0 0.0
    %1015 = vmatprep.subr.mxu0 0.0
    %1016 = vmatpush1.msra.mxu0 0.0
    %1017 = vmatprep.subr.mxu0 0.0
    %1018 = vmatpush1.msra.mxu0 0.0
    %1019 = vmatprep.subr.mxu0 0.0
    %1020 = vmatpush1.msra.mxu0 0.0
    %1021 = vmatprep.subr.mxu0 0.0
    %1022 = vmatpush1.msra.mxu0 0.0
    %1023 = vmatprep.subr.mxu0 0.0
    %1024 = vmatpush1.msra.mxu0 0.0
    %1025 = vmatprep.subr.mxu0 0.0
    %1026 = vmatpush1.msra.mxu0 0.0
    %1027 = vmatprep.subr.mxu0 0.0
    %1028 = vmatpush1.msra.mxu0 0.0
    %1029 = vmatprep.subr.mxu0 0.0
    %1030 = vmatpush1.msra.mxu0 0.0
    %1031 = vmatprep.mubr.f32.mxu0 0.0
    %v1032 = vand.u32 %v960, 4294901760
    %v1033 = vsub.f32 %v960, %v1032
    %v1034 = vand.u32 %v1033, 4294901760
    %v1035 = vsub.f32 %v1033, %v1034
    %v1036 = vand.u32 %v1035, 4294901760
    %1037 = vmatmul.mubr.f32.gmra.mrb[0].mxu0 %v1036
    %v1038 = vpop.f32.mrb[0].mxu0
    %v1039 = vadd.f32 0.0, %v1038
    %v1040 = vpop.f32.mrb[0].mxu0
    %1041 = vdwg.mxu0
    %1042 = vmatprep.subr.mxu0 0.0
    %v1043 = vand.u32 %v964, 4294901760
    %v1044 = vsub.f32 %v964, %v1043
    %v1045 = vand.u32 %v1044, 4294901760
    %v1046 = vsub.f32 %v1044, %v1045
    %v1047 = vand.u32 %v1046, 4294901760
    %1048 = vmatpush1.msra.mxu0 %v1047
    %1049 = vmatprep.subr.mxu0 0.0
    %1050 = vmatpush1.msra.mxu0 0.0
    %1051 = vmatprep.subr.mxu0 0.0
    %1052 = vmatpush1.msra.mxu0 0.0
    %1053 = vmatprep.subr.mxu0 0.0
    %1054 = vmatpush1.msra.mxu0 0.0
    %1055 = vmatprep.subr.mxu0 0.0
    %1056 = vmatpush1.msra.mxu0 0.0
    %1057 = vmatprep.subr.mxu0 0.0
    %1058 = vmatpush1.msra.mxu0 0.0
    %1059 = vmatprep.subr.mxu0 0.0
    %1060 = vmatpush1.msra.mxu0 0.0
    %1061 = vmatprep.subr.mxu0 0.0
    %1062 = vmatpush1.msra.mxu0 0.0
    %1063 = vmatprep.subr.mxu0 0.0
    %1064 = vmatpush1.msra.mxu0 0.0
    %1065 = vmatprep.subr.mxu0 0.0
    %1066 = vmatpush1.msra.mxu0 0.0
    %1067 = vmatprep.subr.mxu0 0.0
    %1068 = vmatpush1.msra.mxu0 0.0
    %1069 = vmatprep.subr.mxu0 0.0
    %1070 = vmatpush1.msra.mxu0 0.0
    %1071 = vmatprep.subr.mxu0 0.0
    %1072 = vmatpush1.msra.mxu0 0.0
    %1073 = vmatprep.subr.mxu0 0.0
    %1074 = vmatpush1.msra.mxu0 0.0
    %1075 = vmatprep.subr.mxu0 0.0
    %1076 = vmatpush1.msra.mxu0 0.0
    %1077 = vmatprep.subr.mxu0 0.0
    %1078 = vmatpush1.msra.mxu0 0.0
    %1079 = vmatprep.subr.mxu0 0.0
    %1080 = vmatpush1.msra.mxu0 0.0
    %1081 = vmatprep.subr.mxu0 0.0
    %1082 = vmatpush1.msra.mxu0 0.0
    %1083 = vmatprep.subr.mxu0 0.0
    %1084 = vmatpush1.msra.mxu0 0.0
    %1085 = vmatprep.subr.mxu0 0.0
    %1086 = vmatpush1.msra.mxu0 0.0
    %1087 = vmatprep.subr.mxu0 0.0
    %1088 = vmatpush1.msra.mxu0 0.0
    %1089 = vmatprep.subr.mxu0 0.0
    %1090 = vmatpush1.msra.mxu0 0.0
    %1091 = vmatprep.subr.mxu0 0.0
    %1092 = vmatpush1.msra.mxu0 0.0
    %1093 = vmatprep.subr.mxu0 0.0
    %1094 = vmatpush1.msra.mxu0 0.0
    %1095 = vmatprep.subr.mxu0 0.0
    %1096 = vmatpush1.msra.mxu0 0.0
    %1097 = vmatprep.subr.mxu0 0.0
    %1098 = vmatpush1.msra.mxu0 0.0
    %1099 = vmatprep.subr.mxu0 0.0
    %1100 = vmatpush1.msra.mxu0 0.0
    %1101 = vmatprep.subr.mxu0 0.0
    %1102 = vmatpush1.msra.mxu0 0.0
    %1103 = vmatprep.subr.mxu0 0.0
    %1104 = vmatpush1.msra.mxu0 0.0
    %1105 = vmatprep.subr.mxu0 0.0
    %1106 = vmatpush1.msra.mxu0 0.0
    %1107 = vmatprep.subr.mxu0 0.0
    %1108 = vmatpush1.msra.mxu0 0.0
    %1109 = vmatprep.subr.mxu0 0.0
    %1110 = vmatpush1.msra.mxu0 0.0
    %1111 = vmatprep.mubr.f32.mxu0 0.0
    %v1112 = vand.u32 %v960, 4294901760
    %1113 = vmatmul.mubr.f32.gmra.mrb[0].mxu0 %v1112
    %v1114 = vpop.f32.mrb[0].mxu0
    %v1115 = vadd.f32 %v1039, %v1114
    %v1116 = vpop.f32.mrb[0].mxu0
    %1117 = vdwg.mxu0
    %1118 = vmatprep.subr.mxu0 0.0
    %v1119 = vand.u32 %v964, 4294901760
    %v1120 = vsub.f32 %v964, %v1119
    %1121 = vmatpush1.msra.mxu0 %v1120
    %1122 = vmatprep.subr.mxu0 0.0
    %1123 = vmatpush1.msra.mxu0 0.0
    %1124 = vmatprep.subr.mxu0 0.0
    %1125 = vmatpush1.msra.mxu0 0.0
    %1126 = vmatprep.subr.mxu0 0.0
    %1127 = vmatpush1.msra.mxu0 0.0
    %1128 = vmatprep.subr.mxu0 0.0
    %1129 = vmatpush1.msra.mxu0 0.0
    %1130 = vmatprep.subr.mxu0 0.0
    %1131 = vmatpush1.msra.mxu0 0.0
    %1132 = vmatprep.subr.mxu0 0.0
    %1133 = vmatpush1.msra.mxu0 0.0
    %1134 = vmatprep.subr.mxu0 0.0
    %1135 = vmatpush1.msra.mxu0 0.0
    %1136 = vmatprep.subr.mxu0 0.0
    %1137 = vmatpush1.msra.mxu0 0.0
    %1138 = vmatprep.subr.mxu0 0.0
    %1139 = vmatpush1.msra.mxu0 0.0
    %1140 = vmatprep.subr.mxu0 0.0
    %1141 = vmatpush1.msra.mxu0 0.0
    %1142 = vmatprep.subr.mxu0 0.0
    %1143 = vmatpush1.msra.mxu0 0.0
    %1144 = vmatprep.subr.mxu0 0.0
    %1145 = vmatpush1.msra.mxu0 0.0
    %1146 = vmatprep.subr.mxu0 0.0
    %1147 = vmatpush1.msra.mxu0 0.0
    %1148 = vmatprep.subr.mxu0 0.0
    %1149 = vmatpush1.msra.mxu0 0.0
    %1150 = vmatprep.subr.mxu0 0.0
    %1151 = vmatpush1.msra.mxu0 0.0
    %1152 = vmatprep.subr.mxu0 0.0
    %1153 = vmatpush1.msra.mxu0 0.0
    %1154 = vmatprep.subr.mxu0 0.0
    %1155 = vmatpush1.msra.mxu0 0.0
    %1156 = vmatprep.subr.mxu0 0.0
    %1157 = vmatpush1.msra.mxu0 0.0
    %1158 = vmatprep.subr.mxu0 0.0
    %1159 = vmatpush1.msra.mxu0 0.0
    %1160 = vmatprep.subr.mxu0 0.0
    %1161 = vmatpush1.msra.mxu0 0.0
    %1162 = vmatprep.subr.mxu0 0.0
    %1163 = vmatpush1.msra.mxu0 0.0
    %1164 = vmatprep.subr.mxu0 0.0
    %1165 = vmatpush1.msra.mxu0 0.0
    %1166 = vmatprep.subr.mxu0 0.0
    %1167 = vmatpush1.msra.mxu0 0.0
    %1168 = vmatprep.subr.mxu0 0.0
    %1169 = vmatpush1.msra.mxu0 0.0
    %1170 = vmatprep.subr.mxu0 0.0
    %1171 = vmatpush1.msra.mxu0 0.0
    %1172 = vmatprep.subr.mxu0 0.0
    %1173 = vmatpush1.msra.mxu0 0.0
    %1174 = vmatprep.subr.mxu0 0.0
    %1175 = vmatpush1.msra.mxu0 0.0
    %1176 = vmatprep.subr.mxu0 0.0
    %1177 = vmatpush1.msra.mxu0 0.0
    %1178 = vmatprep.subr.mxu0 0.0
    %1179 = vmatpush1.msra.mxu0 0.0
    %1180 = vmatprep.subr.mxu0 0.0
    %1181 = vmatpush1.msra.mxu0 0.0
    %1182 = vmatprep.subr.mxu0 0.0
    %1183 = vmatpush1.msra.mxu0 0.0
    %1184 = vmatprep.mubr.f32.mxu0 0.0
    %v1185 = vand.u32 %v960, 4294901760
    %v1186 = vsub.f32 %v960, %v1185
    %1187 = vmatmul.mubr.f32.gmra.mrb[0].mxu0 %v1186
    %v1188 = vpop.f32.mrb[0].mxu0
    %v1189 = vadd.f32 %v1115, %v1188
    %v1190 = vpop.f32.mrb[0].mxu0
    %1191 = vdwg.mxu0
    %1192 = vmatprep.subr.mxu0 0.0
    %v1193 = vand.u32 %v964, 4294901760
    %1194 = vmatpush1.msra.mxu0 %v1193
    %1195 = vmatprep.subr.mxu0 0.0
    %1196 = vmatpush1.msra.mxu0 0.0
    %1197 = vmatprep.subr.mxu0 0.0
    %1198 = vmatpush1.msra.mxu0 0.0
    %1199 = vmatprep.subr.mxu0 0.0
    %1200 = vmatpush1.msra.mxu0 0.0
    %1201 = vmatprep.subr.mxu0 0.0
    %1202 = vmatpush1.msra.mxu0 0.0
    %1203 = vmatprep.subr.mxu0 0.0
    %1204 = vmatpush1.msra.mxu0 0.0
    %1205 = vmatprep.subr.mxu0 0.0
    %1206 = vmatpush1.msra.mxu0 0.0
    %1207 = vmatprep.subr.mxu0 0.0
    %1208 = vmatpush1.msra.mxu0 0.0
    %1209 = vmatprep.subr.mxu0 0.0
    %1210 = vmatpush1.msra.mxu0 0.0
    %1211 = vmatprep.subr.mxu0 0.0
    %1212 = vmatpush1.msra.mxu0 0.0
    %1213 = vmatprep.subr.mxu0 0.0
    %1214 = vmatpush1.msra.mxu0 0.0
    %1215 = vmatprep.subr.mxu0 0.0
    %1216 = vmatpush1.msra.mxu0 0.0
    %1217 = vmatprep.subr.mxu0 0.0
    %1218 = vmatpush1.msra.mxu0 0.0
    %1219 = vmatprep.subr.mxu0 0.0
    %1220 = vmatpush1.msra.mxu0 0.0
    %1221 = vmatprep.subr.mxu0 0.0
    %1222 = vmatpush1.msra.mxu0 0.0
    %1223 = vmatprep.subr.mxu0 0.0
    %1224 = vmatpush1.msra.mxu0 0.0
    %1225 = vmatprep.subr.mxu0 0.0
    %1226 = vmatpush1.msra.mxu0 0.0
    %1227 = vmatprep.subr.mxu0 0.0
    %1228 = vmatpush1.msra.mxu0 0.0
    %1229 = vmatprep.subr.mxu0 0.0
    %1230 = vmatpush1.msra.mxu0 0.0
    %1231 = vmatprep.subr.mxu0 0.0
    %1232 = vmatpush1.msra.mxu0 0.0
    %1233 = vmatprep.subr.mxu0 0.0
    %1234 = vmatpush1.msra.mxu0 0.0
    %1235 = vmatprep.subr.mxu0 0.0
    %1236 = vmatpush1.msra.mxu0 0.0
    %1237 = vmatprep.subr.mxu0 0.0
    %1238 = vmatpush1.msra.mxu0 0.0
    %1239 = vmatprep.subr.mxu0 0.0
    %1240 = vmatpush1.msra.mxu0 0.0
    %1241 = vmatprep.subr.mxu0 0.0
    %1242 = vmatpush1.msra.mxu0 0.0
    %1243 = vmatprep.subr.mxu0 0.0
    %1244 = vmatpush1.msra.mxu0 0.0
    %1245 = vmatprep.subr.mxu0 0.0
    %1246 = vmatpush1.msra.mxu0 0.0
    %1247 = vmatprep.subr.mxu0 0.0
    %1248 = vmatpush1.msra.mxu0 0.0
    %1249 = vmatprep.subr.mxu0 0.0
    %1250 = vmatpush1.msra.mxu0 0.0
    %1251 = vmatprep.subr.mxu0 0.0
    %1252 = vmatpush1.msra.mxu0 0.0
    %1253 = vmatprep.subr.mxu0 0.0
    %1254 = vmatpush1.msra.mxu0 0.0
    %1255 = vmatprep.subr.mxu0 0.0
    %1256 = vmatpush1.msra.mxu0 0.0
    %1257 = vmatprep.mubr.f32.mxu0 0.0
    %v1258 = vand.u32 %v960, 4294901760
    %v1259 = vsub.f32 %v960, %v1258
    %v1260 = vand.u32 %v1259, 4294901760
    %1261 = vmatmul.mubr.f32.gmra.mrb[0].mxu0 %v1260
    %v1262 = vpop.f32.mrb[0].mxu0
    %v1263 = vadd.f32 %v1189, %v1262
    %v1264 = vpop.f32.mrb[0].mxu0
    %1265 = vdwg.mxu0
    %1266 = vmatprep.subr.mxu0 0.0
    %v1267 = vand.u32 %v964, 4294901760
    %v1268 = vsub.f32 %v964, %v1267
    %v1269 = vand.u32 %v1268, 4294901760
    %1270 = vmatpush1.msra.mxu0 %v1269
    %1271 = vmatprep.subr.mxu0 0.0
    %1272 = vmatpush1.msra.mxu0 0.0
    %1273 = vmatprep.subr.mxu0 0.0
    %1274 = vmatpush1.msra.mxu0 0.0
    %1275 = vmatprep.subr.mxu0 0.0
    %1276 = vmatpush1.msra.mxu0 0.0
    %1277 = vmatprep.subr.mxu0 0.0
    %1278 = vmatpush1.msra.mxu0 0.0
    %1279 = vmatprep.subr.mxu0 0.0
    %1280 = vmatpush1.msra.mxu0 0.0
    %1281 = vmatprep.subr.mxu0 0.0
    %1282 = vmatpush1.msra.mxu0 0.0
    %1283 = vmatprep.subr.mxu0 0.0
    %1284 = vmatpush1.msra.mxu0 0.0
    %1285 = vmatprep.subr.mxu0 0.0
    %1286 = vmatpush1.msra.mxu0 0.0
    %1287 = vmatprep.subr.mxu0 0.0
    %1288 = vmatpush1.msra.mxu0 0.0
    %1289 = vmatprep.subr.mxu0 0.0
    %1290 = vmatpush1.msra.mxu0 0.0
    %1291 = vmatprep.subr.mxu0 0.0
    %1292 = vmatpush1.msra.mxu0 0.0
    %1293 = vmatprep.subr.mxu0 0.0
    %1294 = vmatpush1.msra.mxu0 0.0
    %1295 = vmatprep.subr.mxu0 0.0
    %1296 = vmatpush1.msra.mxu0 0.0
    %1297 = vmatprep.subr.mxu0 0.0
    %1298 = vmatpush1.msra.mxu0 0.0
    %1299 = vmatprep.subr.mxu0 0.0
    %1300 = vmatpush1.msra.mxu0 0.0
    %1301 = vmatprep.subr.mxu0 0.0
    %1302 = vmatpush1.msra.mxu0 0.0
    %1303 = vmatprep.subr.mxu0 0.0
    %1304 = vmatpush1.msra.mxu0 0.0
    %1305 = vmatprep.subr.mxu0 0.0
    %1306 = vmatpush1.msra.mxu0 0.0
    %1307 = vmatprep.subr.mxu0 0.0
    %1308 = vmatpush1.msra.mxu0 0.0
    %1309 = vmatprep.subr.mxu0 0.0
    %1310 = vmatpush1.msra.mxu0 0.0
    %1311 = vmatprep.subr.mxu0 0.0
    %1312 = vmatpush1.msra.mxu0 0.0
    %1313 = vmatprep.subr.mxu0 0.0
    %1314 = vmatpush1.msra.mxu0 0.0
    %1315 = vmatprep.subr.mxu0 0.0
    %1316 = vmatpush1.msra.mxu0 0.0
    %1317 = vmatprep.subr.mxu0 0.0
    %1318 = vmatpush1.msra.mxu0 0.0
    %1319 = vmatprep.subr.mxu0 0.0
    %1320 = vmatpush1.msra.mxu0 0.0
    %1321 = vmatprep.subr.mxu0 0.0
    %1322 = vmatpush1.msra.mxu0 0.0
    %1323 = vmatprep.subr.mxu0 0.0
    %1324 = vmatpush1.msra.mxu0 0.0
    %1325 = vmatprep.subr.mxu0 0.0
    %1326 = vmatpush1.msra.mxu0 0.0
    %1327 = vmatprep.subr.mxu0 0.0
    %1328 = vmatpush1.msra.mxu0 0.0
    %1329 = vmatprep.subr.mxu0 0.0
    %1330 = vmatpush1.msra.mxu0 0.0
    %1331 = vmatprep.subr.mxu0 0.0
    %1332 = vmatpush1.msra.mxu0 0.0
    %1333 = vmatprep.mubr.f32.mxu0 0.0
    %v1334 = vand.u32 %v960, 4294901760
    %1335 = vmatmul.mubr.f32.gmra.mrb[0].mxu0 %v1334
    %v1336 = vpop.f32.mrb[0].mxu0
    %v1337 = vadd.f32 %v1263, %v1336
    %v1338 = vpop.f32.mrb[0].mxu0
    %1339 = vdwg.mxu0
    %1340 = vmatprep.subr.mxu0 0.0
    %v1341 = vand.u32 %v964, 4294901760
    %1342 = vmatpush1.msra.mxu0 %v1341
    %1343 = vmatprep.subr.mxu0 0.0
    %1344 = vmatpush1.msra.mxu0 0.0
    %1345 = vmatprep.subr.mxu0 0.0
    %1346 = vmatpush1.msra.mxu0 0.0
    %1347 = vmatprep.subr.mxu0 0.0
    %1348 = vmatpush1.msra.mxu0 0.0
    %1349 = vmatprep.subr.mxu0 0.0
    %1350 = vmatpush1.msra.mxu0 0.0
    %1351 = vmatprep.subr.mxu0 0.0
    %1352 = vmatpush1.msra.mxu0 0.0
    %1353 = vmatprep.subr.mxu0 0.0
    %1354 = vmatpush1.msra.mxu0 0.0
    %1355 = vmatprep.subr.mxu0 0.0
    %1356 = vmatpush1.msra.mxu0 0.0
    %1357 = vmatprep.subr.mxu0 0.0
    %1358 = vmatpush1.msra.mxu0 0.0
    %1359 = vmatprep.subr.mxu0 0.0
    %1360 = vmatpush1.msra.mxu0 0.0
    %1361 = vmatprep.subr.mxu0 0.0
    %1362 = vmatpush1.msra.mxu0 0.0
    %1363 = vmatprep.subr.mxu0 0.0
    %1364 = vmatpush1.msra.mxu0 0.0
    %1365 = vmatprep.subr.mxu0 0.0
    %1366 = vmatpush1.msra.mxu0 0.0
    %1367 = vmatprep.subr.mxu0 0.0
    %1368 = vmatpush1.msra.mxu0 0.0
    %1369 = vmatprep.subr.mxu0 0.0
    %1370 = vmatpush1.msra.mxu0 0.0
    %1371 = vmatprep.subr.mxu0 0.0
    %1372 = vmatpush1.msra.mxu0 0.0
    %1373 = vmatprep.subr.mxu0 0.0
    %1374 = vmatpush1.msra.mxu0 0.0
    %1375 = vmatprep.subr.mxu0 0.0
    %1376 = vmatpush1.msra.mxu0 0.0
    %1377 = vmatprep.subr.mxu0 0.0
    %1378 = vmatpush1.msra.mxu0 0.0
    %1379 = vmatprep.subr.mxu0 0.0
    %1380 = vmatpush1.msra.mxu0 0.0
    %1381 = vmatprep.subr.mxu0 0.0
    %1382 = vmatpush1.msra.mxu0 0.0
    %1383 = vmatprep.subr.mxu0 0.0
    %1384 = vmatpush1.msra.mxu0 0.0
    %1385 = vmatprep.subr.mxu0 0.0
    %1386 = vmatpush1.msra.mxu0 0.0
    %1387 = vmatprep.subr.mxu0 0.0
    %1388 = vmatpush1.msra.mxu0 0.0
    %1389 = vmatprep.subr.mxu0 0.0
    %1390 = vmatpush1.msra.mxu0 0.0
    %1391 = vmatprep.subr.mxu0 0.0
    %1392 = vmatpush1.msra.mxu0 0.0
    %1393 = vmatprep.subr.mxu0 0.0
    %1394 = vmatpush1.msra.mxu0 0.0
    %1395 = vmatprep.subr.mxu0 0.0
    %1396 = vmatpush1.msra.mxu0 0.0
    %1397 = vmatprep.subr.mxu0 0.0
    %1398 = vmatpush1.msra.mxu0 0.0
    %1399 = vmatprep.subr.mxu0 0.0
    %1400 = vmatpush1.msra.mxu0 0.0
    %1401 = vmatprep.subr.mxu0 0.0
    %1402 = vmatpush1.msra.mxu0 0.0
    %1403 = vmatprep.subr.mxu0 0.0
    %1404 = vmatpush1.msra.mxu0 0.0
    %1405 = vmatprep.mubr.f32.mxu0 0.0
    %v1406 = vand.u32 %v960, 4294901760
    %1407 = vmatmul.mubr.f32.gmra.mrb[0].mxu0 %v1406
    %v1408 = vpop.f32.mrb[0].mxu0
    %v1409 = vadd.f32 %v1337, %v1408
    %v1410 = vpop.f32.mrb[0].mxu0
    %1411 = vdwg.mxu0
    %v1413 = vsel %vm958, %v957, 0
    %1415 = vmatprep.subr.mxu0 0.0
    %v1416 = vand.u32 %v964, 4294901760
    %1417 = vmatpush1.msra.mxu0 %v1416
    %1418 = vmatprep.subr.mxu0 0.0
    %1419 = vmatpush1.msra.mxu0 0.0
    %1420 = vmatprep.subr.mxu0 0.0
    %1421 = vmatpush1.msra.mxu0 0.0
    %1422 = vmatprep.subr.mxu0 0.0
    %1423 = vmatpush1.msra.mxu0 0.0
    %1424 = vmatprep.subr.mxu0 0.0
    %1425 = vmatpush1.msra.mxu0 0.0
    %1426 = vmatprep.subr.mxu0 0.0
    %1427 = vmatpush1.msra.mxu0 0.0
    %1428 = vmatprep.subr.mxu0 0.0
    %1429 = vmatpush1.msra.mxu0 0.0
    %1430 = vmatprep.subr.mxu0 0.0
    %1431 = vmatpush1.msra.mxu0 0.0
    %1432 = vmatprep.subr.mxu0 0.0
    %1433 = vmatpush1.msra.mxu0 0.0
    %1434 = vmatprep.subr.mxu0 0.0
    %1435 = vmatpush1.msra.mxu0 0.0
    %1436 = vmatprep.subr.mxu0 0.0
    %1437 = vmatpush1.msra.mxu0 0.0
    %1438 = vmatprep.subr.mxu0 0.0
    %1439 = vmatpush1.msra.mxu0 0.0
    %1440 = vmatprep.subr.mxu0 0.0
    %1441 = vmatpush1.msra.mxu0 0.0
    %1442 = vmatprep.subr.mxu0 0.0
    %1443 = vmatpush1.msra.mxu0 0.0
    %1444 = vmatprep.subr.mxu0 0.0
    %1445 = vmatpush1.msra.mxu0 0.0
    %1446 = vmatprep.subr.mxu0 0.0
    %1447 = vmatpush1.msra.mxu0 0.0
    %1448 = vmatprep.subr.mxu0 0.0
    %1449 = vmatpush1.msra.mxu0 0.0
    %1450 = vmatprep.subr.mxu0 0.0
    %1451 = vmatpush1.msra.mxu0 0.0
    %1452 = vmatprep.subr.mxu0 0.0
    %1453 = vmatpush1.msra.mxu0 0.0
    %1454 = vmatprep.subr.mxu0 0.0
    %1455 = vmatpush1.msra.mxu0 0.0
    %1456 = vmatprep.subr.mxu0 0.0
    %1457 = vmatpush1.msra.mxu0 0.0
    %1458 = vmatprep.subr.mxu0 0.0
    %1459 = vmatpush1.msra.mxu0 0.0
    %1460 = vmatprep.subr.mxu0 0.0
    %1461 = vmatpush1.msra.mxu0 0.0
    %1462 = vmatprep.subr.mxu0 0.0
    %1463 = vmatpush1.msra.mxu0 0.0
    %1464 = vmatprep.subr.mxu0 0.0
    %1465 = vmatpush1.msra.mxu0 0.0
    %1466 = vmatprep.subr.mxu0 0.0
    %1467 = vmatpush1.msra.mxu0 0.0
    %1468 = vmatprep.subr.mxu0 0.0
    %1469 = vmatpush1.msra.mxu0 0.0
    %1470 = vmatprep.subr.mxu0 0.0
    %1471 = vmatpush1.msra.mxu0 0.0
    %1472 = vmatprep.subr.mxu0 0.0
    %1473 = vmatpush1.msra.mxu0 0.0
    %1474 = vmatprep.subr.mxu0 0.0
    %1475 = vmatpush1.msra.mxu0 0.0
    %1476 = vmatprep.subr.mxu0 0.0
    %1477 = vmatpush1.msra.mxu0 0.0
    %1478 = vmatprep.subr.mxu0 0.0
    %1479 = vmatpush1.msra.mxu0 0.0
    %1480 = vmatprep.mubr.f32.mxu0 0.0
    %v1481 = vand.u32 %v1413, 4294901760
    %v1482 = vsub.f32 %v1413, %v1481
    %v1483 = vand.u32 %v1482, 4294901760
    %v1484 = vsub.f32 %v1482, %v1483
    %v1485 = vand.u32 %v1484, 4294901760
    %1486 = vmatmul.mubr.f32.gmra.mrb[0].mxu0 %v1485
    %v1487 = vpop.f32.mrb[0].mxu0
    %v1488 = vadd.f32 0.0, %v1487
    %v1489 = vpop.f32.mrb[0].mxu0
    %1490 = vdwg.mxu0
    %1491 = vmatprep.subr.mxu0 0.0
    %v1492 = vand.u32 %v964, 4294901760
    %v1493 = vsub.f32 %v964, %v1492
    %v1494 = vand.u32 %v1493, 4294901760
    %v1495 = vsub.f32 %v1493, %v1494
    %v1496 = vand.u32 %v1495, 4294901760
    %1497 = vmatpush1.msra.mxu0 %v1496
    %1498 = vmatprep.subr.mxu0 0.0
    %1499 = vmatpush1.msra.mxu0 0.0
    %1500 = vmatprep.subr.mxu0 0.0
    %1501 = vmatpush1.msra.mxu0 0.0
    %1502 = vmatprep.subr.mxu0 0.0
    %1503 = vmatpush1.msra.mxu0 0.0
    %1504 = vmatprep.subr.mxu0 0.0
    %1505 = vmatpush1.msra.mxu0 0.0
    %1506 = vmatprep.subr.mxu0 0.0
    %1507 = vmatpush1.msra.mxu0 0.0
    %1508 = vmatprep.subr.mxu0 0.0
    %1509 = vmatpush1.msra.mxu0 0.0
    %1510 = vmatprep.subr.mxu0 0.0
    %1511 = vmatpush1.msra.mxu0 0.0
    %1512 = vmatprep.subr.mxu0 0.0
    %1513 = vmatpush1.msra.mxu0 0.0
    %1514 = vmatprep.subr.mxu0 0.0
    %1515 = vmatpush1.msra.mxu0 0.0
    %1516 = vmatprep.subr.mxu0 0.0
    %1517 = vmatpush1.msra.mxu0 0.0
    %1518 = vmatprep.subr.mxu0 0.0
    %1519 = vmatpush1.msra.mxu0 0.0
    %1520 = vmatprep.subr.mxu0 0.0
    %1521 = vmatpush1.msra.mxu0 0.0
    %1522 = vmatprep.subr.mxu0 0.0
    %1523 = vmatpush1.msra.mxu0 0.0
    %1524 = vmatprep.subr.mxu0 0.0
    %1525 = vmatpush1.msra.mxu0 0.0
    %1526 = vmatprep.subr.mxu0 0.0
    %1527 = vmatpush1.msra.mxu0 0.0
    %1528 = vmatprep.subr.mxu0 0.0
    %1529 = vmatpush1.msra.mxu0 0.0
    %1530 = vmatprep.subr.mxu0 0.0
    %1531 = vmatpush1.msra.mxu0 0.0
    %1532 = vmatprep.subr.mxu0 0.0
    %1533 = vmatpush1.msra.mxu0 0.0
    %1534 = vmatprep.subr.mxu0 0.0
    %1535 = vmatpush1.msra.mxu0 0.0
    %1536 = vmatprep.subr.mxu0 0.0
    %1537 = vmatpush1.msra.mxu0 0.0
    %1538 = vmatprep.subr.mxu0 0.0
    %1539 = vmatpush1.msra.mxu0 0.0
    %1540 = vmatprep.subr.mxu0 0.0
    %1541 = vmatpush1.msra.mxu0 0.0
    %1542 = vmatprep.subr.mxu0 0.0
    %1543 = vmatpush1.msra.mxu0 0.0
    %1544 = vmatprep.subr.mxu0 0.0
    %1545 = vmatpush1.msra.mxu0 0.0
    %1546 = vmatprep.subr.mxu0 0.0
    %1547 = vmatpush1.msra.mxu0 0.0
    %1548 = vmatprep.subr.mxu0 0.0
    %1549 = vmatpush1.msra.mxu0 0.0
    %1550 = vmatprep.subr.mxu0 0.0
    %1551 = vmatpush1.msra.mxu0 0.0
    %1552 = vmatprep.subr.mxu0 0.0
    %1553 = vmatpush1.msra.mxu0 0.0
    %1554 = vmatprep.subr.mxu0 0.0
    %1555 = vmatpush1.msra.mxu0 0.0
    %1556 = vmatprep.subr.mxu0 0.0
    %1557 = vmatpush1.msra.mxu0 0.0
    %1558 = vmatprep.subr.mxu0 0.0
    %1559 = vmatpush1.msra.mxu0 0.0
    %1560 = vmatprep.mubr.f32.mxu0 0.0
    %v1561 = vand.u32 %v1413, 4294901760
    %1562 = vmatmul.mubr.f32.gmra.mrb[0].mxu0 %v1561
    %v1563 = vpop.f32.mrb[0].mxu0
    %v1564 = vadd.f32 %v1488, %v1563
    %v1565 = vpop.f32.mrb[0].mxu0
    %1566 = vdwg.mxu0
    %1567 = vmatprep.subr.mxu0 0.0
    %v1568 = vand.u32 %v964, 4294901760
    %v1569 = vsub.f32 %v964, %v1568
    %1570 = vmatpush1.msra.mxu0 %v1569
    %1571 = vmatprep.subr.mxu0 0.0
    %1572 = vmatpush1.msra.mxu0 0.0
    %1573 = vmatprep.subr.mxu0 0.0
    %1574 = vmatpush1.msra.mxu0 0.0
    %1575 = vmatprep.subr.mxu0 0.0
    %1576 = vmatpush1.msra.mxu0 0.0
    %1577 = vmatprep.subr.mxu0 0.0
    %1578 = vmatpush1.msra.mxu0 0.0
    %1579 = vmatprep.subr.mxu0 0.0
    %1580 = vmatpush1.msra.mxu0 0.0
    %1581 = vmatprep.subr.mxu0 0.0
    %1582 = vmatpush1.msra.mxu0 0.0
    %1583 = vmatprep.subr.mxu0 0.0
    %1584 = vmatpush1.msra.mxu0 0.0
    %1585 = vmatprep.subr.mxu0 0.0
    %1586 = vmatpush1.msra.mxu0 0.0
    %1587 = vmatprep.subr.mxu0 0.0
    %1588 = vmatpush1.msra.mxu0 0.0
    %1589 = vmatprep.subr.mxu0 0.0
    %1590 = vmatpush1.msra.mxu0 0.0
    %1591 = vmatprep.subr.mxu0 0.0
    %1592 = vmatpush1.msra.mxu0 0.0
    %1593 = vmatprep.subr.mxu0 0.0
    %1594 = vmatpush1.msra.mxu0 0.0
    %1595 = vmatprep.subr.mxu0 0.0
    %1596 = vmatpush1.msra.mxu0 0.0
    %1597 = vmatprep.subr.mxu0 0.0
    %1598 = vmatpush1.msra.mxu0 0.0
    %1599 = vmatprep.subr.mxu0 0.0
    %1600 = vmatpush1.msra.mxu0 0.0
    %1601 = vmatprep.subr.mxu0 0.0
    %1602 = vmatpush1.msra.mxu0 0.0
    %1603 = vmatprep.subr.mxu0 0.0
    %1604 = vmatpush1.msra.mxu0 0.0
    %1605 = vmatprep.subr.mxu0 0.0
    %1606 = vmatpush1.msra.mxu0 0.0
    %1607 = vmatprep.subr.mxu0 0.0
    %1608 = vmatpush1.msra.mxu0 0.0
    %1609 = vmatprep.subr.mxu0 0.0
    %1610 = vmatpush1.msra.mxu0 0.0
    %1611 = vmatprep.subr.mxu0 0.0
    %1612 = vmatpush1.msra.mxu0 0.0
    %1613 = vmatprep.subr.mxu0 0.0
    %1614 = vmatpush1.msra.mxu0 0.0
    %1615 = vmatprep.subr.mxu0 0.0
    %1616 = vmatpush1.msra.mxu0 0.0
    %1617 = vmatprep.subr.mxu0 0.0
    %1618 = vmatpush1.msra.mxu0 0.0
    %1619 = vmatprep.subr.mxu0 0.0
    %1620 = vmatpush1.msra.mxu0 0.0
    %1621 = vmatprep.subr.mxu0 0.0
    %1622 = vmatpush1.msra.mxu0 0.0
    %1623 = vmatprep.subr.mxu0 0.0
    %1624 = vmatpush1.msra.mxu0 0.0
    %1625 = vmatprep.subr.mxu0 0.0
    %1626 = vmatpush1.msra.mxu0 0.0
    %1627 = vmatprep.subr.mxu0 0.0
    %1628 = vmatpush1.msra.mxu0 0.0
    %1629 = vmatprep.subr.mxu0 0.0
    %1630 = vmatpush1.msra.mxu0 0.0
    %1631 = vmatprep.subr.mxu0 0.0
    %1632 = vmatpush1.msra.mxu0 0.0
    %1633 = vmatprep.mubr.f32.mxu0 0.0
    %v1634 = vand.u32 %v1413, 4294901760
    %v1635 = vsub.f32 %v1413, %v1634
    %1636 = vmatmul.mubr.f32.gmra.mrb[0].mxu0 %v1635
    %v1637 = vpop.f32.mrb[0].mxu0
    %v1638 = vadd.f32 %v1564, %v1637
    %v1639 = vpop.f32.mrb[0].mxu0
    %1640 = vdwg.mxu0
    %1641 = vmatprep.subr.mxu0 0.0
    %v1642 = vand.u32 %v964, 4294901760
    %1643 = vmatpush1.msra.mxu0 %v1642
    %1644 = vmatprep.subr.mxu0 0.0
    %1645 = vmatpush1.msra.mxu0 0.0
    %1646 = vmatprep.subr.mxu0 0.0
    %1647 = vmatpush1.msra.mxu0 0.0
    %1648 = vmatprep.subr.mxu0 0.0
    %1649 = vmatpush1.msra.mxu0 0.0
    %1650 = vmatprep.subr.mxu0 0.0
    %1651 = vmatpush1.msra.mxu0 0.0
    %1652 = vmatprep.subr.mxu0 0.0
    %1653 = vmatpush1.msra.mxu0 0.0
    %1654 = vmatprep.subr.mxu0 0.0
    %1655 = vmatpush1.msra.mxu0 0.0
    %1656 = vmatprep.subr.mxu0 0.0
    %1657 = vmatpush1.msra.mxu0 0.0
    %1658 = vmatprep.subr.mxu0 0.0
    %1659 = vmatpush1.msra.mxu0 0.0
    %1660 = vmatprep.subr.mxu0 0.0
    %1661 = vmatpush1.msra.mxu0 0.0
    %1662 = vmatprep.subr.mxu0 0.0
    %1663 = vmatpush1.msra.mxu0 0.0
    %1664 = vmatprep.subr.mxu0 0.0
    %1665 = vmatpush1.msra.mxu0 0.0
    %1666 = vmatprep.subr.mxu0 0.0
    %1667 = vmatpush1.msra.mxu0 0.0
    %1668 = vmatprep.subr.mxu0 0.0
    %1669 = vmatpush1.msra.mxu0 0.0
    %1670 = vmatprep.subr.mxu0 0.0
    %1671 = vmatpush1.msra.mxu0 0.0
    %1672 = vmatprep.subr.mxu0 0.0
    %1673 = vmatpush1.msra.mxu0 0.0
    %1674 = vmatprep.subr.mxu0 0.0
    %1675 = vmatpush1.msra.mxu0 0.0
    %1676 = vmatprep.subr.mxu0 0.0
    %1677 = vmatpush1.msra.mxu0 0.0
    %1678 = vmatprep.subr.mxu0 0.0
    %1679 = vmatpush1.msra.mxu0 0.0
    %1680 = vmatprep.subr.mxu0 0.0
    %1681 = vmatpush1.msra.mxu0 0.0
    %1682 = vmatprep.subr.mxu0 0.0
    %1683 = vmatpush1.msra.mxu0 0.0
    %1684 = vmatprep.subr.mxu0 0.0
    %1685 = vmatpush1.msra.mxu0 0.0
    %1686 = vmatprep.subr.mxu0 0.0
    %1687 = vmatpush1.msra.mxu0 0.0
    %1688 = vmatprep.subr.mxu0 0.0
    %1689 = vmatpush1.msra.mxu0 0.0
    %1690 = vmatprep.subr.mxu0 0.0
    %1691 = vmatpush1.msra.mxu0 0.0
    %1692 = vmatprep.subr.mxu0 0.0
    %1693 = vmatpush1.msra.mxu0 0.0
    %1694 = vmatprep.subr.mxu0 0.0
    %1695 = vmatpush1.msra.mxu0 0.0
    %1696 = vmatprep.subr.mxu0 0.0
    %1697 = vmatpush1.msra.mxu0 0.0
    %1698 = vmatprep.subr.mxu0 0.0
    %1699 = vmatpush1.msra.mxu0 0.0
    %1700 = vmatprep.subr.mxu0 0.0
    %1701 = vmatpush1.msra.mxu0 0.0
    %1702 = vmatprep.subr.mxu0 0.0
    %1703 = vmatpush1.msra.mxu0 0.0
    %1704 = vmatprep.subr.mxu0 0.0
    %1705 = vmatpush1.msra.mxu0 0.0
    %1706 = vmatprep.mubr.f32.mxu0 0.0
    %v1707 = vand.u32 %v1413, 4294901760
    %v1708 = vsub.f32 %v1413, %v1707
    %v1709 = vand.u32 %v1708, 4294901760
    %1710 = vmatmul.mubr.f32.gmra.mrb[0].mxu0 %v1709
    %v1711 = vpop.f32.mrb[0].mxu0
    %v1712 = vadd.f32 %v1638, %v1711
    %v1713 = vpop.f32.mrb[0].mxu0
    %1714 = vdwg.mxu0
    %1715 = vmatprep.subr.mxu0 0.0
    %v1716 = vand.u32 %v964, 4294901760
    %v1717 = vsub.f32 %v964, %v1716
    %v1718 = vand.u32 %v1717, 4294901760
    %1719 = vmatpush1.msra.mxu0 %v1718
    %1720 = vmatprep.subr.mxu0 0.0
    %1721 = vmatpush1.msra.mxu0 0.0
    %1722 = vmatprep.subr.mxu0 0.0
    %1723 = vmatpush1.msra.mxu0 0.0
    %1724 = vmatprep.subr.mxu0 0.0
    %1725 = vmatpush1.msra.mxu0 0.0
    %1726 = vmatprep.subr.mxu0 0.0
    %1727 = vmatpush1.msra.mxu0 0.0
    %1728 = vmatprep.subr.mxu0 0.0
    %1729 = vmatpush1.msra.mxu0 0.0
    %1730 = vmatprep.subr.mxu0 0.0
    %1731 = vmatpush1.msra.mxu0 0.0
    %1732 = vmatprep.subr.mxu0 0.0
    %1733 = vmatpush1.msra.mxu0 0.0
    %1734 = vmatprep.subr.mxu0 0.0
    %1735 = vmatpush1.msra.mxu0 0.0
    %1736 = vmatprep.subr.mxu0 0.0
    %1737 = vmatpush1.msra.mxu0 0.0
    %1738 = vmatprep.subr.mxu0 0.0
    %1739 = vmatpush1.msra.mxu0 0.0
    %1740 = vmatprep.subr.mxu0 0.0
    %1741 = vmatpush1.msra.mxu0 0.0
    %1742 = vmatprep.subr.mxu0 0.0
    %1743 = vmatpush1.msra.mxu0 0.0
    %1744 = vmatprep.subr.mxu0 0.0
    %1745 = vmatpush1.msra.mxu0 0.0
    %1746 = vmatprep.subr.mxu0 0.0
    %1747 = vmatpush1.msra.mxu0 0.0
    %1748 = vmatprep.subr.mxu0 0.0
    %1749 = vmatpush1.msra.mxu0 0.0
    %1750 = vmatprep.subr.mxu0 0.0
    %1751 = vmatpush1.msra.mxu0 0.0
    %1752 = vmatprep.subr.mxu0 0.0
    %1753 = vmatpush1.msra.mxu0 0.0
    %1754 = vmatprep.subr.mxu0 0.0
    %1755 = vmatpush1.msra.mxu0 0.0
    %1756 = vmatprep.subr.mxu0 0.0
    %1757 = vmatpush1.msra.mxu0 0.0
    %1758 = vmatprep.subr.mxu0 0.0
    %1759 = vmatpush1.msra.mxu0 0.0
    %1760 = vmatprep.subr.mxu0 0.0
    %1761 = vmatpush1.msra.mxu0 0.0
    %1762 = vmatprep.subr.mxu0 0.0
    %1763 = vmatpush1.msra.mxu0 0.0
    %1764 = vmatprep.subr.mxu0 0.0
    %1765 = vmatpush1.msra.mxu0 0.0
    %1766 = vmatprep.subr.mxu0 0.0
    %1767 = vmatpush1.msra.mxu0 0.0
    %1768 = vmatprep.subr.mxu0 0.0
    %1769 = vmatpush1.msra.mxu0 0.0
    %1770 = vmatprep.subr.mxu0 0.0
    %1771 = vmatpush1.msra.mxu0 0.0
    %1772 = vmatprep.subr.mxu0 0.0
    %1773 = vmatpush1.msra.mxu0 0.0
    %1774 = vmatprep.subr.mxu0 0.0
    %1775 = vmatpush1.msra.mxu0 0.0
    %1776 = vmatprep.subr.mxu0 0.0
    %1777 = vmatpush1.msra.mxu0 0.0
    %1778 = vmatprep.subr.mxu0 0.0
    %1779 = vmatpush1.msra.mxu0 0.0
    %1780 = vmatprep.subr.mxu0 0.0
    %1781 = vmatpush1.msra.mxu0 0.0
    %1782 = vmatprep.mubr.f32.mxu0 0.0
    %v1783 = vand.u32 %v1413, 4294901760
    %1784 = vmatmul.mubr.f32.gmra.mrb[0].mxu0 %v1783
    %v1785 = vpop.f32.mrb[0].mxu0
    %v1786 = vadd.f32 %v1712, %v1785
    %v1787 = vpop.f32.mrb[0].mxu0
    %1788 = vdwg.mxu0
    %1789 = vmatprep.subr.mxu0 0.0
    %v1790 = vand.u32 %v964, 4294901760
    %1791 = vmatpush1.msra.mxu0 %v1790
    %1792 = vmatprep.subr.mxu0 0.0
    %1793 = vmatpush1.msra.mxu0 0.0
    %1794 = vmatprep.subr.mxu0 0.0
    %1795 = vmatpush1.msra.mxu0 0.0
    %1796 = vmatprep.subr.mxu0 0.0
    %1797 = vmatpush1.msra.mxu0 0.0
    %1798 = vmatprep.subr.mxu0 0.0
    %1799 = vmatpush1.msra.mxu0 0.0
    %1800 = vmatprep.subr.mxu0 0.0
    %1801 = vmatpush1.msra.mxu0 0.0
    %1802 = vmatprep.subr.mxu0 0.0
    %1803 = vmatpush1.msra.mxu0 0.0
    %1804 = vmatprep.subr.mxu0 0.0
    %1805 = vmatpush1.msra.mxu0 0.0
    %1806 = vmatprep.subr.mxu0 0.0
    %1807 = vmatpush1.msra.mxu0 0.0
    %1808 = vmatprep.subr.mxu0 0.0
    %1809 = vmatpush1.msra.mxu0 0.0
    %1810 = vmatprep.subr.mxu0 0.0
    %1811 = vmatpush1.msra.mxu0 0.0
    %1812 = vmatprep.subr.mxu0 0.0
    %1813 = vmatpush1.msra.mxu0 0.0
    %1814 = vmatprep.subr.mxu0 0.0
    %1815 = vmatpush1.msra.mxu0 0.0
    %1816 = vmatprep.subr.mxu0 0.0
    %1817 = vmatpush1.msra.mxu0 0.0
    %1818 = vmatprep.subr.mxu0 0.0
    %1819 = vmatpush1.msra.mxu0 0.0
    %1820 = vmatprep.subr.mxu0 0.0
    %1821 = vmatpush1.msra.mxu0 0.0
    %1822 = vmatprep.subr.mxu0 0.0
    %1823 = vmatpush1.msra.mxu0 0.0
    %1824 = vmatprep.subr.mxu0 0.0
    %1825 = vmatpush1.msra.mxu0 0.0
    %1826 = vmatprep.subr.mxu0 0.0
    %1827 = vmatpush1.msra.mxu0 0.0
    %1828 = vmatprep.subr.mxu0 0.0
    %1829 = vmatpush1.msra.mxu0 0.0
    %1830 = vmatprep.subr.mxu0 0.0
    %1831 = vmatpush1.msra.mxu0 0.0
    %1832 = vmatprep.subr.mxu0 0.0
    %1833 = vmatpush1.msra.mxu0 0.0
    %1834 = vmatprep.subr.mxu0 0.0
    %1835 = vmatpush1.msra.mxu0 0.0
    %1836 = vmatprep.subr.mxu0 0.0
    %1837 = vmatpush1.msra.mxu0 0.0
    %1838 = vmatprep.subr.mxu0 0.0
    %1839 = vmatpush1.msra.mxu0 0.0
    %1840 = vmatprep.subr.mxu0 0.0
    %1841 = vmatpush1.msra.mxu0 0.0
    %1842 = vmatprep.subr.mxu0 0.0
    %1843 = vmatpush1.msra.mxu0 0.0
    %1844 = vmatprep.subr.mxu0 0.0
    %1845 = vmatpush1.msra.mxu0 0.0
    %1846 = vmatprep.subr.mxu0 0.0
    %1847 = vmatpush1.msra.mxu0 0.0
    %1848 = vmatprep.subr.mxu0 0.0
    %1849 = vmatpush1.msra.mxu0 0.0
    %1850 = vmatprep.subr.mxu0 0.0
    %1851 = vmatpush1.msra.mxu0 0.0
    %1852 = vmatprep.subr.mxu0 0.0
    %1853 = vmatpush1.msra.mxu0 0.0
    %1854 = vmatprep.mubr.f32.mxu0 0.0
    %v1855 = vand.u32 %v1413, 4294901760
    %1856 = vmatmul.mubr.f32.gmra.mrb[0].mxu0 %v1855
    %v1857 = vpop.f32.mrb[0].mxu0
    %v1858 = vadd.f32 %v1786, %v1857
    %v1859 = vpop.f32.mrb[0].mxu0
    %1860 = vdwg.mxu0
    %v1861 = vmul.f32 %v42, %v1409
    %v1862 = vadd.f32 %v1861, %v1858
    %v1864 = vlaneseq
    %v1865 = vshrl.u32 %v1864, 7
    %v1866 = vsub.s32 0, %v1865
    %v1867 = vrot.slane %v44, %v1866
    %v1869 = vmul.f32 %v1862, %v1867
    %v1871 = vlaneseq
    %v1872 = vshrl.u32 %v1871, 7
    %v1873 = vsub.s32 0, %v1872
    %v1874 = vrot.slane %v45, %v1873
    %v1876 = vadd.f32 %v1869, %v1874
    %1877 = vst [vmem:[#allocation7] sm:$0xf] %v1876
    // Predicated region
    $region26: #{tpu_custom_call.1} parent=1 // pred_check
      _
    $region27: #{tpu_custom_call.1} parent=1 // pred_check_branch
      %1879 = sbr.rel (0) target = $region29
    $region28: #{tpu_custom_call.1} parent=1 // pred_region
      %s1881 = ssub.s32 64, 64
      %1882 = vsyncadd [#allocation4], %s1881
      %s1884 = sshll.u32 [#allocation7], 4
      %s1885 = int_to_ptr.vmem [resolvable:$true] %s1884
      %1887 = dma.vmem_to_hbm [thread:$0]  %s1885, 64, %s4, [#allocation4]
    $region29: #{tpu_custom_call.1} parent=1 // pred_fallthru
      _
    // Predicated region
    $region30: #{tpu_custom_call.1} parent=1 // pred_check
      _
    $region31: #{tpu_custom_call.1} parent=1 // pred_check_branch
      %1889 = sbr.rel (0) target = $region33
    $region32: #{tpu_custom_call.1} parent=1 // pred_region
      %1890 = dma.done [#allocation4], 64
    $region33: #{tpu_custom_call.1} parent=1 // pred_fallthru
      _
    %1891 = vsyncpa [#allocation3], 1
    %1892 = vsyncpa [#allocation6], 1
    %1893 = vsyncpa [#allocation4], 1

</llo_original>
